<compile_context>
chip_gen: v6e
topology: v6e:2x2x1
jax: 0.10.0
libtpu: 0.0.40
codegen_flags: <defaults>
</compile_context>

<pallas_src>
import jax
import jax.numpy as jnp
from jax.experimental import pallas as pl
from jax.experimental.pallas import tpu as pltpu

MESH_NUM = 778        # MANO vertices
KPT_NUM = 16          # MANO joints
POSE_NCOMP = 30       # pose PCA components (MyMANOLayer default)
ROT = 3               # axis-angle global rotation
NCOMPS_FULL = 45      # full hand pose dimension (15 joints * 3)
BLEND_K = 10 + 9 * 15  # 145 = shape bases + pose-map entries
VP = 1024             # vertex axis padded to 8*128 (lane-dense, tileable)
TV = 256              # vertex lane tile per grid step (VP // TV grid steps)


# ----------------------------------------------------------------------------
# Fused Pallas kernel: blendshapes + linear blend skinning, per vertex tile.
#
#   bp  : (B, 145)      [betas | pose_map], cast to bf16 in-kernel
#   r2  : (12*B, 16)    skinning transform rows, layout (k, i, b) row-major,
#                       i.e. row (k*3 + i)*B + b == th_results2[b, i, k, :]
#   bd  : (3, 145, TV)  bf16 stacked [shapedirs; posedirs], plane-major
#   vt  : (3, 1, TV)    f32 v_template, plane-major
#   wT  : (16, TV)      bf16 skinning weights transposed
#   out : (3, B, TV)    f32 planar skinned vertices
#
#   vposed_c = bp @ bd[c] + vt[c]                                  (B, TV)
#   t        = r2 @ wT                                             (12B, TV)
#   out[i]   = t[(3*3+i)B:+B]  (homog. ones row)
#            + sum_c t[(c*3+i)B:+B] * vposed_c
# ----------------------------------------------------------------------------
def _mano_fused_kernel(bp_ref, r2_ref, bd_ref, vt_ref, wT_ref, out_ref):
    B = bp_ref.shape[0]
    bp = bp_ref[...].astype(jnp.bfloat16)          # (B, 145)
    r2 = r2_ref[...].astype(jnp.bfloat16)          # (12B, 16)

    # Skinning transform field for this vertex tile (bf16 MXU, f32 acc).
    t = jnp.dot(r2, wT_ref[...], preferred_element_type=jnp.float32)   # (12B, TV)

    # Posed vertices, per coordinate plane; stay in vregs, never hit HBM.
    vp = [jnp.dot(bp, bd_ref[c], preferred_element_type=jnp.float32) + vt_ref[c]
          for c in range(3)]                       # 3 x (B, TV)

    # r2 rows are (k, i, b)-ordered: contiguous static sublane slices only.
    def trow(k, i):
        s = (k * 3 + i) * B
        return t[s:s + B]                          # (B, TV)

    for i in range(3):                             # output coordinate plane
        acc = trow(3, i)                           # homogeneous "ones" row
        for c in range(3):
            acc = acc + trow(c, i) * vp[c]
        out_ref[i] = acc                           # lane-dense (B, TV) store


def mano_vertices_pallas(bp, r2_flat, bd_p, vt_p, wT):
    B = bp.shape[0]
    n_tiles = VP // TV
    return pl.pallas_call(
        _mano_fused_kernel,
        out_shape=jax.ShapeDtypeStruct((3, B, VP), jnp.float32),
        grid=(n_tiles,),
        in_specs=[
            pl.BlockSpec((B, BLEND_K), lambda v: (0, 0)),
            pl.BlockSpec((12 * B, KPT_NUM), lambda v: (0, 0)),
            pl.BlockSpec((3, BLEND_K, TV), lambda v: (0, 0, v)),
            pl.BlockSpec((3, 1, TV), lambda v: (0, 0, v)),
            pl.BlockSpec((KPT_NUM, TV), lambda v: (0, v)),
        ],
        out_specs=pl.BlockSpec((3, B, TV), lambda v: (0, 0, v)),
        compiler_params=pltpu.CompilerParams(
            dimension_semantics=("parallel",)),
    )(bp, r2_flat, bd_p, vt_p, wT)
    # TODO(synk): for very large B, additionally tile the batch axis (block ~8-32)
    # to bound the (12B, TV) intermediate on v7x's 64 MiB VMEM.


# ----------------------------------------------------------------------------
# Plain-JAX glue (tiny ops): Rodrigues, joint regression, kinematic chain,
# joint reordering, centering.
# ----------------------------------------------------------------------------
def quat2mat(quat):
    nq = quat / jnp.linalg.norm(quat, axis=1, keepdims=True)
    w, x, y, z = nq[:, 0], nq[:, 1], nq[:, 2], nq[:, 3]
    w2, x2, y2, z2 = w * w, x * x, y * y, z * z
    wx, wy, wz = w * x, w * y, w * z
    xy, xz, yz = x * y, x * z, y * z
    rot = jnp.stack([
        w2 + x2 - y2 - z2, 2 * xy - 2 * wz, 2 * wy + 2 * xz,
        2 * wz + 2 * xy, w2 - x2 + y2 - z2, 2 * yz - 2 * wx,
        2 * xz - 2 * wy, 2 * wx + 2 * yz, w2 - x2 - y2 + z2], axis=1)
    return rot  # (N, 9)


def batch_rodrigues(axisang):  # (N, 3) -> (N, 9)
    # faithful to manopth (adds 1e-8 per component before the norm)
    angle = jnp.linalg.norm(axisang + 1e-8, axis=1, keepdims=True)
    normed = axisang / angle
    half = angle * 0.5
    quat = jnp.concatenate([jnp.cos(half), jnp.sin(half) * normed], axis=1)
    return quat2mat(quat)


def th_with_zeros(x):  # (N, 3, 4) -> (N, 4, 4)
    N = x.shape[0]
    pad = jnp.broadcast_to(jnp.array([0., 0., 0., 1.], dtype=x.dtype), (N, 1, 4))
    return jnp.concatenate([x, pad], axis=1)


def mano_forward(params, pose_coeffs, betas):
    B = pose_coeffs.shape[0]
    # PCA pose projection + hands mean (flat_hand_mean=False)
    hand_pose = pose_coeffs[:, ROT:ROT + POSE_NCOMP]
    full_hand_pose = hand_pose @ params['selected_comps']                 # (B,45)
    full_pose = jnp.concatenate(
        [pose_coeffs[:, :ROT], params['hands_mean'][None] + full_hand_pose], axis=1)

    # Rodrigues for 16 axis-angle rotations
    rot_mats = batch_rodrigues(full_pose.reshape(-1, 3)).reshape(B, 16 * 9)
    flat_id = jnp.tile(jnp.eye(3, dtype=jnp.float32).reshape(9), (16,))
    pose_maps = rot_mats - flat_id[None]
    root_rot = rot_mats[:, :9].reshape(B, 3, 3)
    rot_map = rot_mats[:, 9:]            # (B, 135)
    pose_map = pose_maps[:, 9:]          # (B, 135)

    # Joint regression, hoisted out of the kernel algebraically:
    #   th_j = betas @ (J_regressor @ shapedirs) + J_regressor @ v_template
    th_j = (jnp.einsum('bs,sjc->bjc', betas, params['Jshape'])
            + params['Jtmpl'][None])                       # (B, 16, 3)

    # kinematic chain (tiny 4x4 matmuls, plain JAX), BEFORE any Pallas call
    root_j = th_j[:, 0, :].reshape(B, 3, 1)
    root_trans = th_with_zeros(jnp.concatenate([root_rot, root_j], axis=2))
    all_rots = rot_map.reshape(B, 15, 3, 3)
    lev1_idxs = [1, 4, 7, 10, 13]
    lev2_idxs = [2, 5, 8, 11, 14]
    lev3_idxs = [3, 6, 9, 12, 15]
    lev1_rots = all_rots[:, [i - 1 for i in lev1_idxs]]
    lev2_rots = all_rots[:, [i - 1 for i in lev2_idxs]]
    lev3_rots = all_rots[:, [i - 1 for i in lev3_idxs]]
    lev1_j = th_j[:, lev1_idxs]
    lev2_j = th_j[:, lev2_idxs]
    lev3_j = th_j[:, lev3_idxs]

    lev1_j_rel = lev1_j - jnp.transpose(root_j, (0, 2, 1))
    lev1_rel = th_with_zeros(
        jnp.concatenate([lev1_rots, lev1_j_rel[..., None]], axis=3).reshape(-1, 3, 4))
    root_trans_flt = jnp.tile(root_trans[:, None], (1, 5, 1, 1)).reshape(B * 5, 4, 4)
    lev1_flt = jnp.matmul(root_trans_flt, lev1_rel)

    lev2_j_rel = lev2_j - lev1_j
    lev2_rel = th_with_zeros(
        jnp.concatenate([lev2_rots, lev2_j_rel[..., None]], axis=3).reshape(-1, 3, 4))
    lev2_flt = jnp.matmul(lev1_flt, lev2_rel)

    lev3_j_rel = lev3_j - lev2_j
    lev3_rel = th_with_zeros(
        jnp.concatenate([lev3_rots, lev3_j_rel[..., None]], axis=3).reshape(-1, 3, 4))
    lev3_flt = jnp.matmul(lev2_flt, lev3_rel)

    all_transforms = jnp.concatenate(
        [root_trans[:, None], lev1_flt.reshape(B, 5, 4, 4),
         lev2_flt.reshape(B, 5, 4, 4), lev3_flt.reshape(B, 5, 4, 4)], axis=1)
    reorder_idxs = jnp.array([0, 1, 6, 11, 2, 7, 12, 3, 8, 13, 4, 9, 14, 5, 10, 15])
    th_results = all_transforms[:, reorder_idxs]          # (B, 16, 4, 4)
    th_results_global = th_results

    joint_js = jnp.concatenate([th_j, jnp.zeros((B, KPT_NUM, 1), th_j.dtype)], axis=2)
    tmp2 = jnp.matmul(th_results, joint_js[..., None])    # (B, 16, 4, 1)
    th_results2 = th_results - jnp.concatenate(
        [jnp.zeros((B, KPT_NUM, 4, 3), tmp2.dtype), tmp2], axis=3)
    th_results2 = jnp.transpose(th_results2, (0, 2, 3, 1))  # (B, 4, 4, 16) = [b,i,k,j]

    # Only output rows i=0..2 are ever read; re-order rows to (k, i, b) so the
    # kernel only needs contiguous sublane slices of t = r2 @ wT.
    # NOTE: row index (k*3 + i)*B + b must match th_results2[b, i, k, :].
    r2_flat = jnp.transpose(th_results2[:, :3, :, :], (2, 1, 0, 3)).reshape(12 * B, 16)

    # --- fused Pallas kernel: blendshapes + LBS, planar lane-padded output ---
    bp = jnp.concatenate([betas, pose_map], axis=1)        # (B, 145)
    verts_p = mano_vertices_pallas(bp, r2_flat, params['bd_p'],
                                   params['vt_p'], params['wT'])   # (3, B, VP)

    # epilogue relayout: downstream (tips gather, centering, output contract)
    # needs (B, 778, 3); accepted knowingly.
    th_verts = jnp.transpose(verts_p, (1, 2, 0))[:, :MESH_NUM, :]   # (B, 778, 3)

    th_jtr = th_results_global[:, :, :3, 3]                  # (B, 16, 3)
    tips = th_verts[:, jnp.array([745, 317, 444, 556, 673])]  # side == 'right'
    th_jtr = jnp.concatenate([th_jtr, tips], axis=1)
    th_jtr = th_jtr[:, jnp.array([0, 13, 14, 15, 16, 1, 2, 3, 17, 4, 5, 6, 18,
                                  10, 11, 12, 19, 7, 8, 9, 20])]
    # th_trans defaults to zeros -> center on center_idx = 9
    center = th_jtr[:, 9:10]
    th_jtr = th_jtr - center
    th_verts = th_verts - center
    return th_verts, th_jtr


# ----------------------------------------------------------------------------
# Deterministic synthetic MANO parameters (same shapes as the .pkl buffers),
# re-laid-out planar + lane-padded + precomputed joint regressors.
# ----------------------------------------------------------------------------
def build_params(key):
    # TODO(synk): real weights come from data/MANO_RIGHT.pkl; the script may not
    # read files, so deterministic synthetic buffers with identical shapes are
    # used instead.
    ks = jax.random.split(key, 8)
    shapedirs = 0.03 * jax.random.normal(ks[0], (MESH_NUM, 3, 10), jnp.float32)
    posedirs = 0.01 * jax.random.normal(ks[1], (MESH_NUM, 3, 135), jnp.float32)
    v_template = 0.1 * jax.random.normal(ks[2], (MESH_NUM, 3), jnp.float32)
    j_raw = jax.random.uniform(ks[3], (KPT_NUM, MESH_NUM), jnp.float32)
    J_regressor = j_raw / j_raw.sum(axis=1, keepdims=True)
    w_raw = jax.random.uniform(ks[4], (MESH_NUM, KPT_NUM), jnp.float32)
    weights = w_raw / w_raw.sum(axis=1, keepdims=True)
    hands_components = 0.5 * jax.random.normal(ks[5], (NCOMPS_FULL, NCOMPS_FULL), jnp.float32)
    hands_mean = 0.1 * jax.random.normal(ks[6], (NCOMPS_FULL,), jnp.float32)
    faces = jax.random.randint(ks[7], (1538, 3), 0, MESH_NUM, jnp.int32)

    pad = VP - MESH_NUM
    # planar (coordinate-major) layouts, vertex axis zero-padded to VP lanes
    sd_p = jnp.pad(jnp.transpose(shapedirs, (1, 2, 0)),         # (3, 10, V)
                   ((0, 0), (0, 0), (0, pad)))                  # (3, 10, VP)
    pd_p = jnp.pad(jnp.transpose(posedirs, (1, 2, 0)),          # (3, 135, V)
                   ((0, 0), (0, 0), (0, pad)))                  # (3, 135, VP)
    bd_p = jnp.concatenate([sd_p, pd_p], axis=1).astype(jnp.bfloat16)  # (3, 145, VP)
    vt_p = jnp.pad(v_template.T[:, None, :], ((0, 0), (0, 0), (0, pad)))  # (3,1,VP)
    wT = jnp.pad(weights.T, ((0, 0), (0, pad))).astype(jnp.bfloat16)   # (16, VP)

    # precomputed joint regression: th_j = betas @ Jshape + Jtmpl
    Jshape = jnp.einsum('jv,vcs->sjc', J_regressor, shapedirs)   # (10, 16, 3)
    Jtmpl = J_regressor @ v_template                             # (16, 3)

    return dict(
        bd_p=bd_p, vt_p=vt_p, wT=wT, Jshape=Jshape, Jtmpl=Jtmpl,
        selected_comps=hands_components[:POSE_NCOMP],           # (30, 45)
        hands_mean=hands_mean,
        faces=faces,
    )


class MyMANOLayerPallas:
    """JAX/Pallas equivalent of MyMANOLayer (center_idx=9, right hand, PCA pose)."""

    def __init__(self):
        self.params = build_params(jax.random.PRNGKey(1))
        self._fwd = jax.jit(lambda pose, shape: mano_forward(self.params, pose, shape))

    def __call__(self, hand_params):
        pose = hand_params['pose_params'].astype(jnp.float32)
        shape = hand_params['shape_params'].astype(jnp.float32)
        verts, _ = self._fwd(pose, shape)
        B = pose.shape[0]
        mesh_face = jnp.broadcast_to(self.params['faces'][None],
                                     (B,) + self.params['faces'].shape)
        # TODO(synk): pytorch3d Meshes container has no JAX/Pallas equivalent;
        # return the raw (verts, faces) pair instead.
        return {'skin_meshes': (verts, mesh_face), 'mano_verts': verts}


if __name__ == "__main__":
    key = jax.random.PRNGKey(0)
    k_pose, k_shape = jax.random.split(key)
    B = 2
    pose_params = 0.1 * jax.random.normal(k_pose, (B, ROT + POSE_NCOMP), jnp.float32)
    shape_params = 0.1 * jax.random.normal(k_shape, (B, 10), jnp.float32)

    layer = MyMANOLayerPallas()
    out = layer({'pose_params': pose_params, 'shape_params': shape_params})
    verts = jax.block_until_ready(out['mano_verts'])

    assert verts.shape == (B, MESH_NUM, 3), verts.shape
    assert bool(jnp.all(jnp.isfinite(verts)))
    print("KERNEL_OK")
</pallas_src>

<mosaic_0001>
module attributes {stable_mosaic.version = 11 : i64} {
  func.func @_mano_fused_kernel(%arg0: i32, %arg1: memref<2x145xf32, #tpu.memory_space<vmem>>, %arg2: memref<24x16xf32, #tpu.memory_space<vmem>>, %arg3: memref<3x145x256xbf16, #tpu.memory_space<vmem>>, %arg4: memref<3x1x256xf32, #tpu.memory_space<vmem>>, %arg5: memref<16x256xbf16, #tpu.memory_space<vmem>>, %arg6: memref<3x2x256xf32, #tpu.memory_space<vmem>>) attributes {dimension_semantics = [#tpu.dimension_semantics<parallel>], iteration_bounds = array<i64: 4>, scalar_prefetch = 0 : i64, scratch_operands = 0 : i64, tpu.core_type = #tpu.core_type<tc>, window_params = [{pipeline_mode = #tpu.pipeline_mode<synchronous>, transform_indices = @transform_0, window_bounds = array<i64: 2, 145>}, {pipeline_mode = #tpu.pipeline_mode<synchronous>, transform_indices = @transform_1, window_bounds = array<i64: 24, 16>}, {transform_indices = @transform_2, window_bounds = array<i64: 3, 145, 256>}, {transform_indices = @transform_3, window_bounds = array<i64: 3, 1, 256>}, {transform_indices = @transform_4, window_bounds = array<i64: 16, 256>}, {transform_indices = @transform_5, window_bounds = array<i64: 3, 2, 256>}]} {
    %c0 = arith.constant 0 : index
    %c0_0 = arith.constant 0 : index
    %0 = vector.load %arg1[%c0, %c0_0] : memref<2x145xf32, #tpu.memory_space<vmem>>, vector<2x145xf32>
    %1 = arith.truncf %0 : vector<2x145xf32> to vector<2x145xbf16>
    %c0_1 = arith.constant 0 : index
    %c0_2 = arith.constant 0 : index
    %2 = vector.load %arg2[%c0_1, %c0_2] : memref<24x16xf32, #tpu.memory_space<vmem>>, vector<24x16xf32>
    %3 = arith.truncf %2 : vector<24x16xf32> to vector<24x16xbf16>
    %c0_3 = arith.constant 0 : index
    %c0_4 = arith.constant 0 : index
    %4 = vector.load %arg5[%c0_3, %c0_4] : memref<16x256xbf16, #tpu.memory_space<vmem>>, vector<16x256xbf16>
    %cst = arith.constant dense<0.000000e+00> : vector<24x256xf32>
    %5 = tpu.matmul %3, %4, %cst {dimension_numbers = #tpu.dot_dimension_numbers<[1], [0], [0], [1], [0, 0, 1, 1], [], []>} : vector<24x16xbf16>, vector<16x256xbf16>, vector<24x256xf32> -> vector<24x256xf32>
    %c0_5 = arith.constant 0 : index
    %c0_6 = arith.constant 0 : index
    %c0_7 = arith.constant 0 : index
    %6 = vector.load %arg3[%c0_5, %c0_6, %c0_7] : memref<3x145x256xbf16, #tpu.memory_space<vmem>>, vector<1x145x256xbf16>
    %7 = vector.shape_cast %6 : vector<1x145x256xbf16> to vector<145x256xbf16>
    %cst_8 = arith.constant dense<0.000000e+00> : vector<2x256xf32>
    %8 = tpu.matmul %1, %7, %cst_8 {dimension_numbers = #tpu.dot_dimension_numbers<[1], [0], [0], [1], [0, 0, 1, 1], [], []>} : vector<2x145xbf16>, vector<145x256xbf16>, vector<2x256xf32> -> vector<2x256xf32>
    %c0_9 = arith.constant 0 : index
    %c0_10 = arith.constant 0 : index
    %c0_11 = arith.constant 0 : index
    %9 = vector.load %arg4[%c0_9, %c0_10, %c0_11] : memref<3x1x256xf32, #tpu.memory_space<vmem>>, vector<1x1x256xf32>
    %10 = vector.shape_cast %9 : vector<1x1x256xf32> to vector<1x256xf32>
    %11 = vector.broadcast %10 : vector<1x256xf32> to vector<2x256xf32>
    %12 = arith.addf %8, %11 : vector<2x256xf32>
    %c1 = arith.constant 1 : index
    %c0_12 = arith.constant 0 : index
    %c0_13 = arith.constant 0 : index
    %13 = vector.load %arg3[%c1, %c0_12, %c0_13] : memref<3x145x256xbf16, #tpu.memory_space<vmem>>, vector<1x145x256xbf16>
    %14 = vector.shape_cast %13 : vector<1x145x256xbf16> to vector<145x256xbf16>
    %cst_14 = arith.constant dense<0.000000e+00> : vector<2x256xf32>
    %15 = tpu.matmul %1, %14, %cst_14 {dimension_numbers = #tpu.dot_dimension_numbers<[1], [0], [0], [1], [0, 0, 1, 1], [], []>} : vector<2x145xbf16>, vector<145x256xbf16>, vector<2x256xf32> -> vector<2x256xf32>
    %c1_15 = arith.constant 1 : index
    %c0_16 = arith.constant 0 : index
    %c0_17 = arith.constant 0 : index
    %16 = vector.load %arg4[%c1_15, %c0_16, %c0_17] : memref<3x1x256xf32, #tpu.memory_space<vmem>>, vector<1x1x256xf32>
    %17 = vector.shape_cast %16 : vector<1x1x256xf32> to vector<1x256xf32>
    %18 = vector.broadcast %17 : vector<1x256xf32> to vector<2x256xf32>
    %19 = arith.addf %15, %18 : vector<2x256xf32>
    %c2 = arith.constant 2 : index
    %c0_18 = arith.constant 0 : index
    %c0_19 = arith.constant 0 : index
    %20 = vector.load %arg3[%c2, %c0_18, %c0_19] : memref<3x145x256xbf16, #tpu.memory_space<vmem>>, vector<1x145x256xbf16>
    %21 = vector.shape_cast %20 : vector<1x145x256xbf16> to vector<145x256xbf16>
    %cst_20 = arith.constant dense<0.000000e+00> : vector<2x256xf32>
    %22 = tpu.matmul %1, %21, %cst_20 {dimension_numbers = #tpu.dot_dimension_numbers<[1], [0], [0], [1], [0, 0, 1, 1], [], []>} : vector<2x145xbf16>, vector<145x256xbf16>, vector<2x256xf32> -> vector<2x256xf32>
    %c2_21 = arith.constant 2 : index
    %c0_22 = arith.constant 0 : index
    %c0_23 = arith.constant 0 : index
    %23 = vector.load %arg4[%c2_21, %c0_22, %c0_23] : memref<3x1x256xf32, #tpu.memory_space<vmem>>, vector<1x1x256xf32>
    %24 = vector.shape_cast %23 : vector<1x1x256xf32> to vector<1x256xf32>
    %25 = vector.broadcast %24 : vector<1x256xf32> to vector<2x256xf32>
    %26 = arith.addf %22, %25 : vector<2x256xf32>
    %27 = vector.extract_strided_slice %5 {offsets = [18, 0], sizes = [2, 256], strides = [1, 1]} : vector<24x256xf32> to vector<2x256xf32>
    %28 = vector.extract_strided_slice %5 {offsets = [0, 0], sizes = [2, 256], strides = [1, 1]} : vector<24x256xf32> to vector<2x256xf32>
    %29 = arith.mulf %28, %12 : vector<2x256xf32>
    %30 = arith.addf %27, %29 : vector<2x256xf32>
    %31 = vector.extract_strided_slice %5 {offsets = [6, 0], sizes = [2, 256], strides = [1, 1]} : vector<24x256xf32> to vector<2x256xf32>
    %32 = arith.mulf %31, %19 : vector<2x256xf32>
    %33 = arith.addf %30, %32 : vector<2x256xf32>
    %34 = vector.extract_strided_slice %5 {offsets = [12, 0], sizes = [2, 256], strides = [1, 1]} : vector<24x256xf32> to vector<2x256xf32>
    %35 = arith.mulf %34, %26 : vector<2x256xf32>
    %36 = arith.addf %33, %35 : vector<2x256xf32>
    %c0_24 = arith.constant 0 : index
    %c0_25 = arith.constant 0 : index
    %c0_26 = arith.constant 0 : index
    %37 = vector.load %arg6[%c0_24, %c0_25, %c0_26] : memref<3x2x256xf32, #tpu.memory_space<vmem>>, vector<1x2x256xf32>
    %38 = vector.shape_cast %37 : vector<1x2x256xf32> to vector<2x256xf32>
    %39 = vector.shape_cast %36 : vector<2x256xf32> to vector<1x2x256xf32>
    tpu.vector_store %arg6[%c0_24, %c0_25, %c0_26], %39 {strides = array<i32>} : memref<3x2x256xf32, #tpu.memory_space<vmem>>, vector<1x2x256xf32>,
    %40 = vector.extract_strided_slice %5 {offsets = [20, 0], sizes = [2, 256], strides = [1, 1]} : vector<24x256xf32> to vector<2x256xf32>
    %41 = vector.extract_strided_slice %5 {offsets = [2, 0], sizes = [2, 256], strides = [1, 1]} : vector<24x256xf32> to vector<2x256xf32>
    %42 = arith.mulf %41, %12 : vector<2x256xf32>
    %43 = arith.addf %40, %42 : vector<2x256xf32>
    %44 = vector.extract_strided_slice %5 {offsets = [8, 0], sizes = [2, 256], strides = [1, 1]} : vector<24x256xf32> to vector<2x256xf32>
    %45 = arith.mulf %44, %19 : vector<2x256xf32>
    %46 = arith.addf %43, %45 : vector<2x256xf32>
    %47 = vector.extract_strided_slice %5 {offsets = [14, 0], sizes = [2, 256], strides = [1, 1]} : vector<24x256xf32> to vector<2x256xf32>
    %48 = arith.mulf %47, %26 : vector<2x256xf32>
    %49 = arith.addf %46, %48 : vector<2x256xf32>
    %c1_27 = arith.constant 1 : index
    %c0_28 = arith.constant 0 : index
    %c0_29 = arith.constant 0 : index
    %50 = vector.load %arg6[%c1_27, %c0_28, %c0_29] : memref<3x2x256xf32, #tpu.memory_space<vmem>>, vector<1x2x256xf32>
    %51 = vector.shape_cast %50 : vector<1x2x256xf32> to vector<2x256xf32>
    %52 = vector.shape_cast %49 : vector<2x256xf32> to vector<1x2x256xf32>
    tpu.vector_store %arg6[%c1_27, %c0_28, %c0_29], %52 {strides = array<i32>} : memref<3x2x256xf32, #tpu.memory_space<vmem>>, vector<1x2x256xf32>,
    %53 = vector.extract_strided_slice %5 {offsets = [22, 0], sizes = [2, 256], strides = [1, 1]} : vector<24x256xf32> to vector<2x256xf32>
    %54 = vector.extract_strided_slice %5 {offsets = [4, 0], sizes = [2, 256], strides = [1, 1]} : vector<24x256xf32> to vector<2x256xf32>
    %55 = arith.mulf %54, %12 : vector<2x256xf32>
    %56 = arith.addf %53, %55 : vector<2x256xf32>
    %57 = vector.extract_strided_slice %5 {offsets = [10, 0], sizes = [2, 256], strides = [1, 1]} : vector<24x256xf32> to vector<2x256xf32>
    %58 = arith.mulf %57, %19 : vector<2x256xf32>
    %59 = arith.addf %56, %58 : vector<2x256xf32>
    %60 = vector.extract_strided_slice %5 {offsets = [16, 0], sizes = [2, 256], strides = [1, 1]} : vector<24x256xf32> to vector<2x256xf32>
    %61 = arith.mulf %60, %26 : vector<2x256xf32>
    %62 = arith.addf %59, %61 : vector<2x256xf32>
    %c2_30 = arith.constant 2 : index
    %c0_31 = arith.constant 0 : index
    %c0_32 = arith.constant 0 : index
    %63 = vector.load %arg6[%c2_30, %c0_31, %c0_32] : memref<3x2x256xf32, #tpu.memory_space<vmem>>, vector<1x2x256xf32>
    %64 = vector.shape_cast %63 : vector<1x2x256xf32> to vector<2x256xf32>
    %65 = vector.shape_cast %62 : vector<2x256xf32> to vector<1x2x256xf32>
    tpu.vector_store %arg6[%c2_30, %c0_31, %c0_32], %65 {strides = array<i32>} : memref<3x2x256xf32, #tpu.memory_space<vmem>>, vector<1x2x256xf32>,
    return
  }
  func.func @transform_0(%arg0: i32) -> (i32, i32) {
    %c0_i32 = arith.constant 0 : i32
    %c0_i32_0 = arith.constant 0 : i32
    %c0_i32_1 = arith.constant 0 : i32
    return %c0_i32, %c0_i32_0 : i32, i32
  }
  func.func @transform_1(%arg0: i32) -> (i32, i32) {
    %c0_i32 = arith.constant 0 : i32
    %c0_i32_0 = arith.constant 0 : i32
    %c0_i32_1 = arith.constant 0 : i32
    return %c0_i32, %c0_i32_0 : i32, i32
  }
  func.func @transform_2(%arg0: i32) -> (i32, i32, i32) {
    %c0_i32 = arith.constant 0 : i32
    %c0_i32_0 = arith.constant 0 : i32
    %c0_i32_1 = arith.constant 0 : i32
    return %c0_i32, %c0_i32_0, %arg0 : i32, i32, i32
  }
  func.func @transform_3(%arg0: i32) -> (i32, i32, i32) {
    %c0_i32 = arith.constant 0 : i32
    %c0_i32_0 = arith.constant 0 : i32
    %c0_i32_1 = arith.constant 0 : i32
    return %c0_i32, %c0_i32_0, %arg0 : i32, i32, i32
  }
  func.func @transform_4(%arg0: i32) -> (i32, i32) {
    %c0_i32 = arith.constant 0 : i32
    %c0_i32_0 = arith.constant 0 : i32
    return %c0_i32, %arg0 : i32, i32
  }
  func.func @transform_5(%arg0: i32) -> (i32, i32, i32) {
    %c0_i32 = arith.constant 0 : i32
    %c0_i32_0 = arith.constant 0 : i32
    %c0_i32_1 = arith.constant 0 : i32
    return %c0_i32, %c0_i32_0, %arg0 : i32, i32, i32
  }
}

</mosaic_0001>

<llo_original>
// kernel: tile.10
$region0: #{tile.10}
  #allocation0 [shape = 's32[1]{0}', space=sflag, size = 0x4, scoped, tag = 'scoped memory for tile.10']
  %s0 = inlined_call_operand.vmem [shape: f32[9], index: 0, kind: input, shape index: {}]
  %s1 = inlined_call_operand.vmem [shape: f32[16,9], index: 1, kind: output, shape index: {}]
  // Predicated region
  $region2: #{tile.10} parent=0 // pred_check
    _
  $region3: #{tile.10} parent=0 // pred_check_branch
    %3 = sbr.rel (0) target = $region5
  $region4: #{tile.10} parent=0 // pred_region
    _
  $region5: #{tile.10} parent=0 // pred_fallthru
    _
  %v4 = vld [vmem:[%s0] ss:$0 sm:$0xff]
  %5 = vst [vmem:[%s1] sm:$0xff] %v4
  %s6 = scalar_lea.vmem %s1, 8
  %7 = vst [vmem:[%s6] sm:$0xff] %v4

// kernel: sub.38
$region0: #{sub.38}
  %s0 = inlined_call_operand.vmem [shape: f32[16,9], index: 0, kind: input, shape index: {}]
  %s1 = inlined_call_operand.vmem [shape: f32[144], index: 1, kind: output, shape index: {}]
  $region1: #{sub.38} parent=0
    #allocation0 [shape = 'u8[4096]{0}', space=vmem, size = 0x1000, scoped, tag = 'scoped mem for output reshape']
    %v2 = vld [vmem:[%s0] sm:$0x1]
    %vm3 = vcmask 72704
    %4 = vst.msk [vmem:[#allocation0] sm:$0x1] %vm3, %v2
    %s5 = scalar_lea.vmem %s0, 14
    %v6 = vld [vmem:[%s5] sm:$0x1]
    %s7 = scalar_lea.vmem %s0, 14
    %v8 = vld [vmem:[%s7] sm:$0x1]
    %vm9 = vcmask 15360
    %v10 = vsel %vm9, %v8, %v6
    %11 = vrot.lane.b32.xlu0 %v10, 126
    %v12 = vpop.permute.xlu0 %11
    %vm13 = vcmask 56320
    %s14 = scalar_lea.vmem [#allocation0], 1
    %15 = vst.msk [vmem:[%s14] sm:$0x1] %vm13, %v12
    %vm16 = vcmask 1048560
    %17 = vst.msk [vmem:[#allocation0] sm:$0x1] %vm16, %v12
    %s18 = scalar_lea.vmem %s0, 13
    %v19 = vld [vmem:[%s18] sm:$0x1]
    %20 = vrot.lane.b32.xlu0 %v19, 117
    %v21 = vpop.permute.xlu0 %20
    %vm22 = vcmask 1032104
    %23 = vst.msk [vmem:[#allocation0] sm:$0x1] %vm22, %v21
    %s24 = scalar_lea.vmem %s0, 12
    %v25 = vld [vmem:[%s24] sm:$0x1]
    %26 = vrot.lane.b32.xlu0 %v25, 108
    %v27 = vpop.permute.xlu0 %26
    %vm28 = vcmask 958304
    %29 = vst.msk [vmem:[#allocation0] sm:$0x1] %vm28, %v27
    %s30 = scalar_lea.vmem %s0, 11
    %v31 = vld [vmem:[%s30] sm:$0x1]
    %32 = vrot.lane.b32.xlu0 %v31, 99
    %v33 = vpop.permute.xlu0 %32
    %vm34 = vcmask 884504
    %35 = vst.msk [vmem:[#allocation0] sm:$0x1] %vm34, %v33
    %s36 = scalar_lea.vmem %s0, 10
    %v37 = vld [vmem:[%s36] sm:$0x1]
    %38 = vrot.lane.b32.xlu0 %v37, 90
    %v39 = vpop.permute.xlu0 %38
    %vm40 = vcmask 810704
    %41 = vst.msk [vmem:[#allocation0] sm:$0x1] %vm40, %v39
    %s42 = scalar_lea.vmem %s0, 9
    %v43 = vld [vmem:[%s42] sm:$0x1]
    %44 = vrot.lane.b32.xlu0 %v43, 81
    %v45 = vpop.permute.xlu0 %44
    %vm46 = vcmask 736904
    %47 = vst.msk [vmem:[#allocation0] sm:$0x1] %vm46, %v45
    %s48 = scalar_lea.vmem %s0, 8
    %v49 = vld [vmem:[%s48] sm:$0x1]
    %50 = vrot.lane.b32.xlu0 %v49, 72
    %v51 = vpop.permute.xlu0 %50
    %vm52 = vcmask 663104
    %53 = vst.msk [vmem:[#allocation0] sm:$0x1] %vm52, %v51
    %s54 = scalar_lea.vmem %s0, 7
    %v55 = vld [vmem:[%s54] sm:$0x1]
    %56 = vrot.lane.b32.xlu0 %v55, 63
    %v57 = vpop.permute.xlu0 %56
    %vm58 = vcmask 589304
    %59 = vst.msk [vmem:[#allocation0] sm:$0x1] %vm58, %v57
    %s60 = scalar_lea.vmem %s0, 6
    %v61 = vld [vmem:[%s60] sm:$0x1]
    %62 = vrot.lane.b32.xlu0 %v61, 54
    %v63 = vpop.permute.xlu0 %62
    %vm64 = vcmask 515504
    %65 = vst.msk [vmem:[#allocation0] sm:$0x1] %vm64, %v63
    %s66 = scalar_lea.vmem %s0, 5
    %v67 = vld [vmem:[%s66] sm:$0x1]
    %68 = vrot.lane.b32.xlu0 %v67, 45
    %v69 = vpop.permute.xlu0 %68
    %vm70 = vcmask 441704
    %71 = vst.msk [vmem:[#allocation0] sm:$0x1] %vm70, %v69
    %s72 = scalar_lea.vmem %s0, 4
    %v73 = vld [vmem:[%s72] sm:$0x1]
    %74 = vrot.lane.b32.xlu0 %v73, 36
    %v75 = vpop.permute.xlu0 %74
    %vm76 = vcmask 367904
    %77 = vst.msk [vmem:[#allocation0] sm:$0x1] %vm76, %v75
    %s78 = scalar_lea.vmem %s0, 3
    %v79 = vld [vmem:[%s78] sm:$0x1]
    %80 = vrot.lane.b32.xlu0 %v79, 27
    %v81 = vpop.permute.xlu0 %80
    %vm82 = vcmask 294104
    %83 = vst.msk [vmem:[#allocation0] sm:$0x1] %vm82, %v81
    %s84 = scalar_lea.vmem %s0, 2
    %v85 = vld [vmem:[%s84] sm:$0x1]
    %86 = vrot.lane.b32.xlu0 %v85, 18
    %v87 = vpop.permute.xlu0 %86
    %vm88 = vcmask 220304
    %89 = vst.msk [vmem:[#allocation0] sm:$0x1] %vm88, %v87
    %s90 = scalar_lea.vmem %s0, 1
    %v91 = vld [vmem:[%s90] sm:$0x1]
    %92 = vrot.lane.b32.xlu0 %v91, 9
    %v93 = vpop.permute.xlu0 %92
    %vm94 = vcmask 146504
    %95 = vst.msk [vmem:[#allocation0] sm:$0x1] %vm94, %v93
    %s96 = scalar_lea.vmem %s0, 15
    %v97 = vld [vmem:[%s96] sm:$0x1]
    %98 = vrot.lane.b32.xlu0 %v97, 7
    %v99 = vpop.permute.xlu0 %98
    %vm100 = vcmask 130104
    %s101 = scalar_lea.vmem [#allocation0], 1
    %102 = vst.msk [vmem:[%s101] sm:$0x1] %vm100, %v99
    %s104 = sshll.u32 1, 2
    %s105 = ssub.s32 %s104, 1
    %v107 = vld [vmem:[#allocation0] sm:%s105]
    %s108 = sshll.u32 1, 2
    %s109 = ssub.s32 %s108, 1
    %110 = vst [vmem:[%s1] sm:%s109] %v107

// kernel: _lambda_.1
$region0: #{_lambda_.1}
  #allocation0 [shape = 'u32[]', space=smem, size = 0x4, offset = 0x4, fixed_abs, tag = 'smem constant byte address 0x4 - core index']
  #allocation1 [shape = 'u32[144,128]{1,0:T(1,128)}', space=vmem, size = 0x12000, scoped, tag = 'internal scratch']
  %s0 = inlined_call_operand.vmem [shape: f32[2,145], index: 0, kind: input, shape index: {}]
  %s1 = inlined_call_operand.vmem [shape: f32[24,16], index: 1, kind: input, shape index: {}]
  %s2 = inlined_call_operand.vmem [shape: bf16[3,145,1024], index: 2, kind: input, shape index: {}]
  %s3 = inlined_call_operand.vmem [shape: f32[3,1,1024], index: 3, kind: input, shape index: {}]
  %s4 = inlined_call_operand.vmem [shape: bf16[16,1024], index: 4, kind: input, shape index: {}]
  %s5 = inlined_call_operand.vmem [shape: f32[3,2,1024], index: 5, kind: output, shape index: {}]
  %s6 = sld [smem:[#allocation0]]
  $region200: #{_lambda_.1} parent=0
    _
  %s8 = ssub.s32 1, %s6
  %s9 = scalar_select 0, %s8, %s6
  $region1: #{_lambda_.1} parent=0
    #allocation2 [shape = 'u8[466944]{0}', space=vmem, size = 0x72000, scoped, tag = 'input window, operand 2']
    #allocation3 [shape = 'u8[6144]{0}', space=vmem, size = 0x1800, scoped, tag = 'input window, operand 3']
    #allocation4 [shape = 'u8[16384]{0}', space=vmem, size = 0x4000, scoped, tag = 'input window, operand 4']
    #allocation5 [shape = 'u8[12288]{0}', space=vmem, size = 0x3000, scoped, tag = 'output window, operand 0']
    loop: start=0, step=1, limit=6
    $region2: #{_lambda_.1} parent=1 // loop_pre_header
      _
    $region3: #{_lambda_.1} parent=1 // loop_header
      %s11 = sphi 0, %s15
      %p12 = scmp.ge.s32.totalorder %s11, 6
      %s19 = sphi 0, %s19
      %s21 = sphi 0, %s19
      %s22 = sphi 0, %s21
      %s36 = sphi 0, %s22
      %s40 = sphi 0, %s40
      %s42 = sphi 0, %s40
      %s43 = sphi 0, %s42
      %s57 = sphi 0, %s43
      %s63 = sphi 0, %s65
      %s66 = sphi 0, %s63
      %s67 = sphi 0, %s66
      %s83 = sphi 0, %s67
      %s89 = sphi 0, %s91
      %s92 = sphi 0, %s89
      %s93 = sphi 0, %s92
      %s109 = sphi 0, %s93
      %s115 = sphi 0, %s117
      %s118 = sphi 0, %s115
      %s119 = sphi 0, %s118
      %s135 = sphi 0, %s119
      %s141 = sphi 0, %s143
      %s144 = sphi 0, %s141
      %s145 = sphi 0, %s144
      %s161 = sphi 0, %s145
    $region4: #{_lambda_.1} parent=1 // loop_header_branch
      %14 = sbr.rel (%p12) target = $region8
    $region5: #{_lambda_.1} parent=1 // loop_body
      %s16 = ssub.s32 %s11, 1
      %s17 = ssub.s32 %s11, 2
      %s18 = sadd.s32 %s11, 1
      %s20 = sadd.s32 %s19, 1
      %p23 = scmp.eq.s32.totalorder %s11, 3
      %p24 = scmp.ne.s32.totalorder %s19, %s21
      %p25 = scmp.eq.s32.totalorder %s11, 0
      %p26 = por %p24, %p25
      %p27 = scmp.ne.s32.totalorder %s19, %s21
      %p28 = scmp.eq.s32.totalorder %s16, 3
      %p29 = por %p27, %p28
      %p30 = scmp.ne.s32.totalorder %s21, %s22
      %p31 = scmp.eq.s32.totalorder %s16, 0
      %p32 = por %p30, %p31
      %p33 = scmp.ne.s32.totalorder %s21, %s22
      %p34 = scmp.eq.s32.totalorder %s17, 3
      %p35 = por %p33, %p34
      %p37 = scmp.ne.s32.totalorder %s22, %s36
      %p38 = scmp.eq.s32.totalorder %s17, 0
      %p39 = por %p37, %p38
      %s41 = sadd.s32 %s40, 1
      %p44 = scmp.eq.s32.totalorder %s11, 3
      %p45 = scmp.ne.s32.totalorder %s40, %s42
      %p46 = scmp.eq.s32.totalorder %s11, 0
      %p47 = por %p45, %p46
      %p48 = scmp.ne.s32.totalorder %s40, %s42
      %p49 = scmp.eq.s32.totalorder %s16, 3
      %p50 = por %p48, %p49
      %p51 = scmp.ne.s32.totalorder %s42, %s43
      %p52 = scmp.eq.s32.totalorder %s16, 0
      %p53 = por %p51, %p52
      %p54 = scmp.ne.s32.totalorder %s42, %s43
      %p55 = scmp.eq.s32.totalorder %s17, 3
      %p56 = por %p54, %p55
      %p58 = scmp.ne.s32.totalorder %s43, %s57
      %p59 = scmp.eq.s32.totalorder %s17, 0
      %p60 = por %p58, %p59
      %s61 = ssub.s32 %s11, %s18
      %p62 = scmp.eq.s32.totalorder %s61, 0
      %s64 = sadd.s32 %s63, 1
      %s65 = scalar_select %p62, %s63, %s64
      %p68 = pneg %p62
      %p69 = scmp.eq.s32.totalorder %s11, 3
      %p70 = por %p68, %p69
      %p71 = scmp.ne.s32.totalorder %s63, %s66
      %p72 = scmp.eq.s32.totalorder %s11, 0
      %p73 = por %p71, %p72
      %p74 = scmp.ne.s32.totalorder %s63, %s66
      %p75 = scmp.eq.s32.totalorder %s16, 3
      %p76 = por %p74, %p75
      %p77 = scmp.ne.s32.totalorder %s66, %s67
      %p78 = scmp.eq.s32.totalorder %s16, 0
      %p79 = por %p77, %p78
      %p80 = scmp.ne.s32.totalorder %s66, %s67
      %p81 = scmp.eq.s32.totalorder %s17, 3
      %p82 = por %p80, %p81
      %p84 = scmp.ne.s32.totalorder %s67, %s83
      %p85 = scmp.eq.s32.totalorder %s17, 0
      %p86 = por %p84, %p85
      %s87 = ssub.s32 %s11, %s18
      %p88 = scmp.eq.s32.totalorder %s87, 0
      %s90 = sadd.s32 %s89, 1
      %s91 = scalar_select %p88, %s89, %s90
      %p94 = pneg %p88
      %p95 = scmp.eq.s32.totalorder %s11, 3
      %p96 = por %p94, %p95
      %p97 = scmp.ne.s32.totalorder %s89, %s92
      %p98 = scmp.eq.s32.totalorder %s11, 0
      %p99 = por %p97, %p98
      %p100 = scmp.ne.s32.totalorder %s89, %s92
      %p101 = scmp.eq.s32.totalorder %s16, 3
      %p102 = por %p100, %p101
      %p103 = scmp.ne.s32.totalorder %s92, %s93
      %p104 = scmp.eq.s32.totalorder %s16, 0
      %p105 = por %p103, %p104
      %p106 = scmp.ne.s32.totalorder %s92, %s93
      %p107 = scmp.eq.s32.totalorder %s17, 3
      %p108 = por %p106, %p107
      %p110 = scmp.ne.s32.totalorder %s93, %s109
      %p111 = scmp.eq.s32.totalorder %s17, 0
      %p112 = por %p110, %p111
      %s113 = ssub.s32 %s11, %s18
      %p114 = scmp.eq.s32.totalorder %s113, 0
      %s116 = sadd.s32 %s115, 1
      %s117 = scalar_select %p114, %s115, %s116
      %p120 = pneg %p114
      %p121 = scmp.eq.s32.totalorder %s11, 3
      %p122 = por %p120, %p121
      %p123 = scmp.ne.s32.totalorder %s115, %s118
      %p124 = scmp.eq.s32.totalorder %s11, 0
      %p125 = por %p123, %p124
      %p126 = scmp.ne.s32.totalorder %s115, %s118
      %p127 = scmp.eq.s32.totalorder %s16, 3
      %p128 = por %p126, %p127
      %p129 = scmp.ne.s32.totalorder %s118, %s119
      %p130 = scmp.eq.s32.totalorder %s16, 0
      %p131 = por %p129, %p130
      %p132 = scmp.ne.s32.totalorder %s118, %s119
      %p133 = scmp.eq.s32.totalorder %s17, 3
      %p134 = por %p132, %p133
      %p136 = scmp.ne.s32.totalorder %s119, %s135
      %p137 = scmp.eq.s32.totalorder %s17, 0
      %p138 = por %p136, %p137
      %s139 = ssub.s32 %s11, %s18
      %p140 = scmp.eq.s32.totalorder %s139, 0
      %s142 = sadd.s32 %s141, 1
      %s143 = scalar_select %p140, %s141, %s142
      %p146 = pneg %p140
      %p147 = scmp.eq.s32.totalorder %s11, 3
      %p148 = por %p146, %p147
      %p149 = scmp.ne.s32.totalorder %s141, %s144
      %p150 = scmp.eq.s32.totalorder %s11, 0
      %p151 = por %p149, %p150
      %p152 = scmp.ne.s32.totalorder %s141, %s144
      %p153 = scmp.eq.s32.totalorder %s16, 3
      %p154 = por %p152, %p153
      %p155 = scmp.ne.s32.totalorder %s144, %s145
      %p156 = scmp.eq.s32.totalorder %s16, 0
      %p157 = por %p155, %p156
      %p158 = scmp.ne.s32.totalorder %s144, %s145
      %p159 = scmp.eq.s32.totalorder %s17, 3
      %p160 = por %p158, %p159
      %p162 = scmp.ne.s32.totalorder %s145, %s161
      %p163 = scmp.eq.s32.totalorder %s17, 0
      %p164 = por %p162, %p163
      %p165 = scmp.le.s32.totalorder 1, %s11
      %p166 = scmp.lt.s32.totalorder %s11, 5
      %p167 = pnand %p165, %p166
      %p168 = pneg %p167
      // Predicated region
      $region9: #{_lambda_.1} parent=5 // pred_check
        _
      $region10: #{_lambda_.1} parent=5 // pred_check_branch
        %170 = sbr.rel (%p167) target = $region12
      $region11: #{_lambda_.1} parent=5 // pred_region
        %s171 = ssub.s32 %s11, 1
        // Predicated region
        $region13: #{_lambda_.1} parent=11 // pred_check
          %p172 = pneg %p32
        $region14: #{_lambda_.1} parent=11 // pred_check_branch
          %174 = sbr.rel (%p172) target = $region16
        $region15: #{_lambda_.1} parent=11 // pred_region
          _
        $region16: #{_lambda_.1} parent=11 // pred_fallthru
          _
        // Predicated region
        $region17: #{_lambda_.1} parent=11 // pred_check
          %p175 = pneg %p53
        $region18: #{_lambda_.1} parent=11 // pred_check_branch
          %177 = sbr.rel (%p175) target = $region20
        $region19: #{_lambda_.1} parent=11 // pred_region
          _
        $region20: #{_lambda_.1} parent=11 // pred_fallthru
          _
      $region12: #{_lambda_.1} parent=5 // pred_fallthru
        _
      %p178 = scmp.lt.s32.totalorder %s11, 4
      // Predicated region
      $region21: #{_lambda_.1} parent=5 // pred_check
        %p179 = pneg %p178
      $region22: #{_lambda_.1} parent=5 // pred_check_branch
        %181 = sbr.rel (%p179) target = $region24
      $region23: #{_lambda_.1} parent=5 // pred_region
        // Predicated region
        $region25: #{_lambda_.1} parent=23 // pred_check
          %p182 = pneg %p73
        $region26: #{_lambda_.1} parent=23 // pred_check_branch
          %184 = sbr.rel (%p182) target = $region28
        $region27: #{_lambda_.1} parent=23 // pred_region
          %s185 = sand.u32 %s63, 1
          %s186 = sand.u32 %s63, 1
          %s187 = smul.addr %s186, 456
          %s188 = scalar_lea.vmem [#allocation2], %s187
          %s189 = smul.u32 2, %s11
          %s190 = smul.addr %s189, 4
          %s191 = scalar_lea.vmem %s2, %s190
          // Predicated region
          $region29: #{_lambda_.1} parent=27 // pred_check
            _
          $region30: #{_lambda_.1} parent=27 // pred_check_branch
            %193 = sbr.rel (0) target = $region32
          $region31: #{_lambda_.1} parent=27 // pred_region
            // Predicated region
            $region33: #{_lambda_.1} parent=31 // pred_check
              _
            $region34: #{_lambda_.1} parent=31 // pred_check_branch
              %195 = sbr.rel (0) target = $region36
            $region35: #{_lambda_.1} parent=31 // pred_region
              // Predicated region
              $region48: #{_lambda_.1} parent=35 // pred_check
                _
              $region49: #{_lambda_.1} parent=35 // pred_check_branch
                %323 = sbr.rel (0) target = $region51
              $region50: #{_lambda_.1} parent=35 // pred_region
                loop: start=0, step=1, limit=1
                $region52: #{_lambda_.1} parent=50 // loop_pre_header
                  _
                $region53: #{_lambda_.1} parent=50 // loop_header
                  %s325 = sphi 0, %s329
                  %p326 = scmp.ge.s32.totalorder %s325, 1
                  %s330 = sphi %s191, %s191
                  %s331 = sphi %s188, %s188
                $region54: #{_lambda_.1} parent=50 // loop_header_branch
                  %328 = sbr.rel (%p326) target = $region58
                $region55: #{_lambda_.1} parent=50 // loop_body
                  %v332 = vld [vmem:[%s330] sm:$0xff]
                  %333 = vst [vmem:[%s331] sm:$0xff] %v332
                  %v334 = vld [vmem:[%s330 + $0x20] sm:$0xff]
                  %335 = vst [vmem:[%s331 + $0x8] sm:$0xff] %v334
                  %v336 = vld [vmem:[%s330 + $0x40] sm:$0xff]
                  %337 = vst [vmem:[%s331 + $0x10] sm:$0xff] %v336
                  %v338 = vld [vmem:[%s330 + $0x60] sm:$0xff]
                  %339 = vst [vmem:[%s331 + $0x18] sm:$0xff] %v338
                  %v340 = vld [vmem:[%s330 + $0x80] sm:$0xff]
                  %341 = vst [vmem:[%s331 + $0x20] sm:$0xff] %v340
                  %v342 = vld [vmem:[%s330 + $0xa0] sm:$0xff]
                  %343 = vst [vmem:[%s331 + $0x28] sm:$0xff] %v342
                  %v344 = vld [vmem:[%s330 + $0xc0] sm:$0xff]
                  %345 = vst [vmem:[%s331 + $0x30] sm:$0xff] %v344
                  %v346 = vld [vmem:[%s330 + $0xe0] sm:$0xff]
                  %347 = vst [vmem:[%s331 + $0x38] sm:$0xff] %v346
                  %v348 = vld [vmem:[%s330 + $0x100] sm:$0xff]
                  %349 = vst [vmem:[%s331 + $0x40] sm:$0xff] %v348
                  %v350 = vld [vmem:[%s330 + $0x120] sm:$0xff]
                  %351 = vst [vmem:[%s331 + $0x48] sm:$0xff] %v350
                  %v352 = vld [vmem:[%s330 + $0x140] sm:$0xff]
                  %353 = vst [vmem:[%s331 + $0x50] sm:$0xff] %v352
                  %v354 = vld [vmem:[%s330 + $0x160] sm:$0xff]
                  %355 = vst [vmem:[%s331 + $0x58] sm:$0xff] %v354
                  %v356 = vld [vmem:[%s330 + $0x180] sm:$0xff]
                  %357 = vst [vmem:[%s331 + $0x60] sm:$0xff] %v356
                  %v358 = vld [vmem:[%s330 + $0x1a0] sm:$0xff]
                  %359 = vst [vmem:[%s331 + $0x68] sm:$0xff] %v358
                  %v360 = vld [vmem:[%s330 + $0x1c0] sm:$0xff]
                  %361 = vst [vmem:[%s331 + $0x70] sm:$0xff] %v360
                  %v362 = vld [vmem:[%s330 + $0x1e0] sm:$0xff]
                  %363 = vst [vmem:[%s331 + $0x78] sm:$0xff] %v362
                  %v364 = vld [vmem:[%s330 + $0x200] sm:$0xff]
                  %365 = vst [vmem:[%s331 + $0x80] sm:$0xff] %v364
                  %v366 = vld [vmem:[%s330 + $0x220] sm:$0xff]
                  %367 = vst [vmem:[%s331 + $0x88] sm:$0xff] %v366
                  %v368 = vld [vmem:[%s330 + $0x240] sm:$0xff]
                  %369 = vst [vmem:[%s331 + $0x90] sm:$0xff] %v368
                  %v370 = vld [vmem:[%s330 + $0x260] sm:$0xff]
                  %371 = vst [vmem:[%s331 + $0x98] sm:$0xff] %v370
                  %v372 = vld [vmem:[%s330 + $0x280] sm:$0xff]
                  %373 = vst [vmem:[%s331 + $0xa0] sm:$0xff] %v372
                  %v374 = vld [vmem:[%s330 + $0x2a0] sm:$0xff]
                  %375 = vst [vmem:[%s331 + $0xa8] sm:$0xff] %v374
                  %v376 = vld [vmem:[%s330 + $0x2c0] sm:$0xff]
                  %377 = vst [vmem:[%s331 + $0xb0] sm:$0xff] %v376
                  %v378 = vld [vmem:[%s330 + $0x2e0] sm:$0xff]
                  %379 = vst [vmem:[%s331 + $0xb8] sm:$0xff] %v378
                  %v380 = vld [vmem:[%s330 + $0x300] sm:$0xff]
                  %381 = vst [vmem:[%s331 + $0xc0] sm:$0xff] %v380
                  %v382 = vld [vmem:[%s330 + $0x320] sm:$0xff]
                  %383 = vst [vmem:[%s331 + $0xc8] sm:$0xff] %v382
                  %v384 = vld [vmem:[%s330 + $0x340] sm:$0xff]
                  %385 = vst [vmem:[%s331 + $0xd0] sm:$0xff] %v384
                  %v386 = vld [vmem:[%s330 + $0x360] sm:$0xff]
                  %387 = vst [vmem:[%s331 + $0xd8] sm:$0xff] %v386
                  %v388 = vld [vmem:[%s330 + $0x380] sm:$0xff]
                  %389 = vst [vmem:[%s331 + $0xe0] sm:$0xff] %v388
                  %v390 = vld [vmem:[%s330 + $0x3a0] sm:$0xff]
                  %391 = vst [vmem:[%s331 + $0xe8] sm:$0xff] %v390
                  %v392 = vld [vmem:[%s330 + $0x3c0] sm:$0xff]
                  %393 = vst [vmem:[%s331 + $0xf0] sm:$0xff] %v392
                  %v394 = vld [vmem:[%s330 + $0x3e0] sm:$0xff]
                  %395 = vst [vmem:[%s331 + $0xf8] sm:$0xff] %v394
                  %v396 = vld [vmem:[%s330 + $0x400] sm:$0xff]
                  %397 = vst [vmem:[%s331 + $0x100] sm:$0xff] %v396
                  %v398 = vld [vmem:[%s330 + $0x420] sm:$0xff]
                  %399 = vst [vmem:[%s331 + $0x108] sm:$0xff] %v398
                  %v400 = vld [vmem:[%s330 + $0x440] sm:$0xff]
                  %401 = vst [vmem:[%s331 + $0x110] sm:$0xff] %v400
                  %v402 = vld [vmem:[%s330 + $0x460] sm:$0xff]
                  %403 = vst [vmem:[%s331 + $0x118] sm:$0xff] %v402
                  %v404 = vld [vmem:[%s330 + $0x480] sm:$0xff]
                  %405 = vst [vmem:[%s331 + $0x120] sm:$0xff] %v404
                  %v406 = vld [vmem:[%s330 + $0x4a0] sm:$0xff]
                  %407 = vst [vmem:[%s331 + $0x128] sm:$0xff] %v406
                  %v408 = vld [vmem:[%s330 + $0x4c0] sm:$0xff]
                  %409 = vst [vmem:[%s331 + $0x130] sm:$0xff] %v408
                  %v410 = vld [vmem:[%s330 + $0x4e0] sm:$0xff]
                  %411 = vst [vmem:[%s331 + $0x138] sm:$0xff] %v410
                  %v412 = vld [vmem:[%s330 + $0x500] sm:$0xff]
                  %413 = vst [vmem:[%s331 + $0x140] sm:$0xff] %v412
                  %v414 = vld [vmem:[%s330 + $0x520] sm:$0xff]
                  %415 = vst [vmem:[%s331 + $0x148] sm:$0xff] %v414
                  %v416 = vld [vmem:[%s330 + $0x540] sm:$0xff]
                  %417 = vst [vmem:[%s331 + $0x150] sm:$0xff] %v416
                  %v418 = vld [vmem:[%s330 + $0x560] sm:$0xff]
                  %419 = vst [vmem:[%s331 + $0x158] sm:$0xff] %v418
                  %v420 = vld [vmem:[%s330 + $0x580] sm:$0xff]
                  %421 = vst [vmem:[%s331 + $0x160] sm:$0xff] %v420
                  %v422 = vld [vmem:[%s330 + $0x5a0] sm:$0xff]
                  %423 = vst [vmem:[%s331 + $0x168] sm:$0xff] %v422
                  %v424 = vld [vmem:[%s330 + $0x5c0] sm:$0xff]
                  %425 = vst [vmem:[%s331 + $0x170] sm:$0xff] %v424
                  %v426 = vld [vmem:[%s330 + $0x5e0] sm:$0xff]
                  %427 = vst [vmem:[%s331 + $0x178] sm:$0xff] %v426
                  %v428 = vld [vmem:[%s330 + $0x600] sm:$0xff]
                  %429 = vst [vmem:[%s331 + $0x180] sm:$0xff] %v428
                  %v430 = vld [vmem:[%s330 + $0x620] sm:$0xff]
                  %431 = vst [vmem:[%s331 + $0x188] sm:$0xff] %v430
                  %v432 = vld [vmem:[%s330 + $0x640] sm:$0xff]
                  %433 = vst [vmem:[%s331 + $0x190] sm:$0xff] %v432
                  %v434 = vld [vmem:[%s330 + $0x660] sm:$0xff]
                  %435 = vst [vmem:[%s331 + $0x198] sm:$0xff] %v434
                  %v436 = vld [vmem:[%s330 + $0x680] sm:$0xff]
                  %437 = vst [vmem:[%s331 + $0x1a0] sm:$0xff] %v436
                  %v438 = vld [vmem:[%s330 + $0x6a0] sm:$0xff]
                  %439 = vst [vmem:[%s331 + $0x1a8] sm:$0xff] %v438
                  %v440 = vld [vmem:[%s330 + $0x6c0] sm:$0xff]
                  %441 = vst [vmem:[%s331 + $0x1b0] sm:$0xff] %v440
                  %v442 = vld [vmem:[%s330 + $0x6e0] sm:$0xff]
                  %443 = vst [vmem:[%s331 + $0x1b8] sm:$0xff] %v442
                  %v444 = vld [vmem:[%s330 + $0x700] sm:$0xff]
                  %445 = vst [vmem:[%s331 + $0x1c0] sm:$0xff] %v444
                $region56: #{_lambda_.1} parent=50 // loop_footer
                  %s329 = sadd.s32 1, %s325
                $region57: #{_lambda_.1} parent=50 // loop_footer_branch
                  %324 = sbr.rel target = $region53
                $region58: #{_lambda_.1} parent=50 // loop_exit
                  _
              $region51: #{_lambda_.1} parent=35 // pred_fallthru
                _
              // Predicated region
              $region59: #{_lambda_.1} parent=35 // pred_check
                _
              $region60: #{_lambda_.1} parent=35 // pred_check_branch
                %447 = sbr.rel target = $region62
              $region61: #{_lambda_.1} parent=35 // pred_region
                _
              $region62: #{_lambda_.1} parent=35 // pred_fallthru
                _
            $region36: #{_lambda_.1} parent=31 // pred_fallthru
              _
            // Predicated region
            $region37: #{_lambda_.1} parent=31 // pred_check
              _
            $region38: #{_lambda_.1} parent=31 // pred_check_branch
              %197 = sbr.rel target = $region40
            $region39: #{_lambda_.1} parent=31 // pred_region
              %s199 = ssub.s32 256, 1
              loop: start=0, step=1, limit=1
              $region41: #{_lambda_.1} parent=39 // loop_pre_header
                _
              $region42: #{_lambda_.1} parent=39 // loop_header
                %s201 = sphi 0, %s205
                %p202 = scmp.ge.s32.totalorder %s201, 1
                %s206 = sphi %s191, %s191
                %s207 = sphi %s188, %s188
              $region43: #{_lambda_.1} parent=39 // loop_header_branch
                %204 = sbr.rel (%p202) target = $region47
              $region44: #{_lambda_.1} parent=39 // loop_body
                %v208 = vld [vmem:[%s206] sm:%s199]
                %209 = vst [vmem:[%s207] sm:%s199] %v208
                %v210 = vld [vmem:[%s206 + $0x20] sm:%s199]
                %211 = vst [vmem:[%s207 + $0x8] sm:%s199] %v210
                %v212 = vld [vmem:[%s206 + $0x40] sm:%s199]
                %213 = vst [vmem:[%s207 + $0x10] sm:%s199] %v212
                %v214 = vld [vmem:[%s206 + $0x60] sm:%s199]
                %215 = vst [vmem:[%s207 + $0x18] sm:%s199] %v214
                %v216 = vld [vmem:[%s206 + $0x80] sm:%s199]
                %217 = vst [vmem:[%s207 + $0x20] sm:%s199] %v216
                %v218 = vld [vmem:[%s206 + $0xa0] sm:%s199]
                %219 = vst [vmem:[%s207 + $0x28] sm:%s199] %v218
                %v220 = vld [vmem:[%s206 + $0xc0] sm:%s199]
                %221 = vst [vmem:[%s207 + $0x30] sm:%s199] %v220
                %v222 = vld [vmem:[%s206 + $0xe0] sm:%s199]
                %223 = vst [vmem:[%s207 + $0x38] sm:%s199] %v222
                %v224 = vld [vmem:[%s206 + $0x100] sm:%s199]
                %225 = vst [vmem:[%s207 + $0x40] sm:%s199] %v224
                %v226 = vld [vmem:[%s206 + $0x120] sm:%s199]
                %227 = vst [vmem:[%s207 + $0x48] sm:%s199] %v226
                %v228 = vld [vmem:[%s206 + $0x140] sm:%s199]
                %229 = vst [vmem:[%s207 + $0x50] sm:%s199] %v228
                %v230 = vld [vmem:[%s206 + $0x160] sm:%s199]
                %231 = vst [vmem:[%s207 + $0x58] sm:%s199] %v230
                %v232 = vld [vmem:[%s206 + $0x180] sm:%s199]
                %233 = vst [vmem:[%s207 + $0x60] sm:%s199] %v232
                %v234 = vld [vmem:[%s206 + $0x1a0] sm:%s199]
                %235 = vst [vmem:[%s207 + $0x68] sm:%s199] %v234
                %v236 = vld [vmem:[%s206 + $0x1c0] sm:%s199]
                %237 = vst [vmem:[%s207 + $0x70] sm:%s199] %v236
                %v238 = vld [vmem:[%s206 + $0x1e0] sm:%s199]
                %239 = vst [vmem:[%s207 + $0x78] sm:%s199] %v238
                %v240 = vld [vmem:[%s206 + $0x200] sm:%s199]
                %241 = vst [vmem:[%s207 + $0x80] sm:%s199] %v240
                %v242 = vld [vmem:[%s206 + $0x220] sm:%s199]
                %243 = vst [vmem:[%s207 + $0x88] sm:%s199] %v242
                %v244 = vld [vmem:[%s206 + $0x240] sm:%s199]
                %245 = vst [vmem:[%s207 + $0x90] sm:%s199] %v244
                %v246 = vld [vmem:[%s206 + $0x260] sm:%s199]
                %247 = vst [vmem:[%s207 + $0x98] sm:%s199] %v246
                %v248 = vld [vmem:[%s206 + $0x280] sm:%s199]
                %249 = vst [vmem:[%s207 + $0xa0] sm:%s199] %v248
                %v250 = vld [vmem:[%s206 + $0x2a0] sm:%s199]
                %251 = vst [vmem:[%s207 + $0xa8] sm:%s199] %v250
                %v252 = vld [vmem:[%s206 + $0x2c0] sm:%s199]
                %253 = vst [vmem:[%s207 + $0xb0] sm:%s199] %v252
                %v254 = vld [vmem:[%s206 + $0x2e0] sm:%s199]
                %255 = vst [vmem:[%s207 + $0xb8] sm:%s199] %v254
                %v256 = vld [vmem:[%s206 + $0x300] sm:%s199]
                %257 = vst [vmem:[%s207 + $0xc0] sm:%s199] %v256
                %v258 = vld [vmem:[%s206 + $0x320] sm:%s199]
                %259 = vst [vmem:[%s207 + $0xc8] sm:%s199] %v258
                %v260 = vld [vmem:[%s206 + $0x340] sm:%s199]
                %261 = vst [vmem:[%s207 + $0xd0] sm:%s199] %v260
                %v262 = vld [vmem:[%s206 + $0x360] sm:%s199]
                %263 = vst [vmem:[%s207 + $0xd8] sm:%s199] %v262
                %v264 = vld [vmem:[%s206 + $0x380] sm:%s199]
                %265 = vst [vmem:[%s207 + $0xe0] sm:%s199] %v264
                %v266 = vld [vmem:[%s206 + $0x3a0] sm:%s199]
                %267 = vst [vmem:[%s207 + $0xe8] sm:%s199] %v266
                %v268 = vld [vmem:[%s206 + $0x3c0] sm:%s199]
                %269 = vst [vmem:[%s207 + $0xf0] sm:%s199] %v268
                %v270 = vld [vmem:[%s206 + $0x3e0] sm:%s199]
                %271 = vst [vmem:[%s207 + $0xf8] sm:%s199] %v270
                %v272 = vld [vmem:[%s206 + $0x400] sm:%s199]
                %273 = vst [vmem:[%s207 + $0x100] sm:%s199] %v272
                %v274 = vld [vmem:[%s206 + $0x420] sm:%s199]
                %275 = vst [vmem:[%s207 + $0x108] sm:%s199] %v274
                %v276 = vld [vmem:[%s206 + $0x440] sm:%s199]
                %277 = vst [vmem:[%s207 + $0x110] sm:%s199] %v276
                %v278 = vld [vmem:[%s206 + $0x460] sm:%s199]
                %279 = vst [vmem:[%s207 + $0x118] sm:%s199] %v278
                %v280 = vld [vmem:[%s206 + $0x480] sm:%s199]
                %281 = vst [vmem:[%s207 + $0x120] sm:%s199] %v280
                %v282 = vld [vmem:[%s206 + $0x4a0] sm:%s199]
                %283 = vst [vmem:[%s207 + $0x128] sm:%s199] %v282
                %v284 = vld [vmem:[%s206 + $0x4c0] sm:%s199]
                %285 = vst [vmem:[%s207 + $0x130] sm:%s199] %v284
                %v286 = vld [vmem:[%s206 + $0x4e0] sm:%s199]
                %287 = vst [vmem:[%s207 + $0x138] sm:%s199] %v286
                %v288 = vld [vmem:[%s206 + $0x500] sm:%s199]
                %289 = vst [vmem:[%s207 + $0x140] sm:%s199] %v288
                %v290 = vld [vmem:[%s206 + $0x520] sm:%s199]
                %291 = vst [vmem:[%s207 + $0x148] sm:%s199] %v290
                %v292 = vld [vmem:[%s206 + $0x540] sm:%s199]
                %293 = vst [vmem:[%s207 + $0x150] sm:%s199] %v292
                %v294 = vld [vmem:[%s206 + $0x560] sm:%s199]
                %295 = vst [vmem:[%s207 + $0x158] sm:%s199] %v294
                %v296 = vld [vmem:[%s206 + $0x580] sm:%s199]
                %297 = vst [vmem:[%s207 + $0x160] sm:%s199] %v296
                %v298 = vld [vmem:[%s206 + $0x5a0] sm:%s199]
                %299 = vst [vmem:[%s207 + $0x168] sm:%s199] %v298
                %v300 = vld [vmem:[%s206 + $0x5c0] sm:%s199]
                %301 = vst [vmem:[%s207 + $0x170] sm:%s199] %v300
                %v302 = vld [vmem:[%s206 + $0x5e0] sm:%s199]
                %303 = vst [vmem:[%s207 + $0x178] sm:%s199] %v302
                %v304 = vld [vmem:[%s206 + $0x600] sm:%s199]
                %305 = vst [vmem:[%s207 + $0x180] sm:%s199] %v304
                %v306 = vld [vmem:[%s206 + $0x620] sm:%s199]
                %307 = vst [vmem:[%s207 + $0x188] sm:%s199] %v306
                %v308 = vld [vmem:[%s206 + $0x640] sm:%s199]
                %309 = vst [vmem:[%s207 + $0x190] sm:%s199] %v308
                %v310 = vld [vmem:[%s206 + $0x660] sm:%s199]
                %311 = vst [vmem:[%s207 + $0x198] sm:%s199] %v310
                %v312 = vld [vmem:[%s206 + $0x680] sm:%s199]
                %313 = vst [vmem:[%s207 + $0x1a0] sm:%s199] %v312
                %v314 = vld [vmem:[%s206 + $0x6a0] sm:%s199]
                %315 = vst [vmem:[%s207 + $0x1a8] sm:%s199] %v314
                %v316 = vld [vmem:[%s206 + $0x6c0] sm:%s199]
                %317 = vst [vmem:[%s207 + $0x1b0] sm:%s199] %v316
                %v318 = vld [vmem:[%s206 + $0x6e0] sm:%s199]
                %319 = vst [vmem:[%s207 + $0x1b8] sm:%s199] %v318
                %v320 = vld [vmem:[%s206 + $0x700] sm:%s199]
                %321 = vst [vmem:[%s207 + $0x1c0] sm:%s199] %v320
              $region45: #{_lambda_.1} parent=39 // loop_footer
                %s205 = sadd.s32 1, %s201
              $region46: #{_lambda_.1} parent=39 // loop_footer_branch
                %200 = sbr.rel target = $region42
              $region47: #{_lambda_.1} parent=39 // loop_exit
                _
            $region40: #{_lambda_.1} parent=31 // pred_fallthru
              _
          $region32: #{_lambda_.1} parent=27 // pred_fallthru
            _
          %448 = vnop
        $region28: #{_lambda_.1} parent=23 // pred_fallthru
          _
        // Predicated region
        $region63: #{_lambda_.1} parent=23 // pred_check
          %p449 = pneg %p99
        $region64: #{_lambda_.1} parent=23 // pred_check_branch
          %451 = sbr.rel (%p449) target = $region66
        $region65: #{_lambda_.1} parent=23 // pred_region
          %s452 = sand.u32 %s89, 1
          %s453 = sand.u32 %s89, 1
          %s454 = smul.addr %s453, 6
          %s455 = scalar_lea.vmem [#allocation3], %s454
          %s456 = smul.u32 2, %s11
          %s457 = scalar_lea.vmem %s3, %s456
          // Predicated region
          $region67: #{_lambda_.1} parent=65 // pred_check
            _
          $region68: #{_lambda_.1} parent=65 // pred_check_branch
            %459 = sbr.rel (0) target = $region70
          $region69: #{_lambda_.1} parent=65 // pred_region
            // Predicated region
            $region71: #{_lambda_.1} parent=69 // pred_check
              _
            $region72: #{_lambda_.1} parent=69 // pred_check_branch
              %461 = sbr.rel target = $region74
            $region73: #{_lambda_.1} parent=69 // pred_region
              // Predicated region
              $region86: #{_lambda_.1} parent=73 // pred_check
                _
              $region87: #{_lambda_.1} parent=73 // pred_check_branch
                %481 = sbr.rel (0) target = $region89
              $region88: #{_lambda_.1} parent=73 // pred_region
                %s483 = ssub.s32 4, 1
                loop: start=0, step=1, limit=1
                $region90: #{_lambda_.1} parent=88 // loop_pre_header
                  _
                $region91: #{_lambda_.1} parent=88 // loop_header
                  %s485 = sphi 0, %s489
                  %p486 = scmp.ge.s32.totalorder %s485, 1
                  %s490 = sphi %s457, %s457
                  %s491 = sphi %s455, %s455
                $region92: #{_lambda_.1} parent=88 // loop_header_branch
                  %488 = sbr.rel (%p486) target = $region96
                $region93: #{_lambda_.1} parent=88 // loop_body
                  %v492 = vld [vmem:[%s490] sm:%s483]
                  %493 = vst [vmem:[%s491] sm:%s483] %v492
                  %v494 = vld [vmem:[%s490 + $0x8] sm:%s483]
                  %495 = vst [vmem:[%s491 + $0x2] sm:%s483] %v494
                  %v496 = vld [vmem:[%s490 + $0x10] sm:%s483]
                  %497 = vst [vmem:[%s491 + $0x4] sm:%s483] %v496
                $region94: #{_lambda_.1} parent=88 // loop_footer
                  %s489 = sadd.s32 1, %s485
                $region95: #{_lambda_.1} parent=88 // loop_footer_branch
                  %484 = sbr.rel target = $region91
                $region96: #{_lambda_.1} parent=88 // loop_exit
                  _
              $region89: #{_lambda_.1} parent=73 // pred_fallthru
                _
            $region74: #{_lambda_.1} parent=69 // pred_fallthru
              _
            // Predicated region
            $region75: #{_lambda_.1} parent=69 // pred_check
              _
            $region76: #{_lambda_.1} parent=69 // pred_check_branch
              %463 = sbr.rel (0) target = $region78
            $region77: #{_lambda_.1} parent=69 // pred_region
              %s465 = ssub.s32 4, 1
              loop: start=0, step=1, limit=1
              $region79: #{_lambda_.1} parent=77 // loop_pre_header
                _
              $region80: #{_lambda_.1} parent=77 // loop_header
                %s467 = sphi 0, %s471
                %p468 = scmp.ge.s32.totalorder %s467, 1
                %s472 = sphi %s457, %s457
                %s473 = sphi %s455, %s455
              $region81: #{_lambda_.1} parent=77 // loop_header_branch
                %470 = sbr.rel (%p468) target = $region85
              $region82: #{_lambda_.1} parent=77 // loop_body
                %v474 = vld [vmem:[%s472] sm:%s465]
                %475 = vst [vmem:[%s473] sm:%s465] %v474
                %v476 = vld [vmem:[%s472 + $0x8] sm:%s465]
                %477 = vst [vmem:[%s473 + $0x2] sm:%s465] %v476
                %v478 = vld [vmem:[%s472 + $0x10] sm:%s465]
                %479 = vst [vmem:[%s473 + $0x4] sm:%s465] %v478
              $region83: #{_lambda_.1} parent=77 // loop_footer
                %s471 = sadd.s32 1, %s467
              $region84: #{_lambda_.1} parent=77 // loop_footer_branch
                %466 = sbr.rel target = $region80
              $region85: #{_lambda_.1} parent=77 // loop_exit
                _
            $region78: #{_lambda_.1} parent=69 // pred_fallthru
              _
          $region70: #{_lambda_.1} parent=65 // pred_fallthru
            _
          %498 = vnop
        $region66: #{_lambda_.1} parent=23 // pred_fallthru
          _
        // Predicated region
        $region97: #{_lambda_.1} parent=23 // pred_check
          %p499 = pneg %p125
        $region98: #{_lambda_.1} parent=23 // pred_check_branch
          %501 = sbr.rel (%p499) target = $region100
        $region99: #{_lambda_.1} parent=23 // pred_region
          %s502 = sand.u32 %s115, 1
          %s503 = sand.u32 %s115, 1
          %s504 = smul.addr %s503, 16
          %s505 = scalar_lea.vmem [#allocation4], %s504
          %s506 = smul.u32 2, %s11
          %s507 = smul.addr %s506, 4
          %s508 = scalar_lea.vmem %s4, %s507
          // Predicated region
          $region101: #{_lambda_.1} parent=99 // pred_check
            _
          $region102: #{_lambda_.1} parent=99 // pred_check_branch
            %510 = sbr.rel (0) target = $region104
          $region103: #{_lambda_.1} parent=99 // pred_region
            // Predicated region
            $region105: #{_lambda_.1} parent=103 // pred_check
              _
            $region106: #{_lambda_.1} parent=103 // pred_check_branch
              %512 = sbr.rel (0) target = $region108
            $region107: #{_lambda_.1} parent=103 // pred_region
              // Predicated region
              $region120: #{_lambda_.1} parent=107 // pred_check
                _
              $region121: #{_lambda_.1} parent=107 // pred_check_branch
                %530 = sbr.rel (0) target = $region123
              $region122: #{_lambda_.1} parent=107 // pred_region
                loop: start=0, step=1, limit=1
                $region124: #{_lambda_.1} parent=122 // loop_pre_header
                  _
                $region125: #{_lambda_.1} parent=122 // loop_header
                  %s532 = sphi 0, %s536
                  %p533 = scmp.ge.s32.totalorder %s532, 1
                  %s537 = sphi %s508, %s508
                  %s538 = sphi %s505, %s505
                $region126: #{_lambda_.1} parent=122 // loop_header_branch
                  %535 = sbr.rel (%p533) target = $region130
                $region127: #{_lambda_.1} parent=122 // loop_body
                  %v539 = vld [vmem:[%s537] sm:$0xff]
                  %540 = vst [vmem:[%s538] sm:$0xff] %v539
                  %v541 = vld [vmem:[%s537 + $0x20] sm:$0xff]
                  %542 = vst [vmem:[%s538 + $0x8] sm:$0xff] %v541
                $region128: #{_lambda_.1} parent=122 // loop_footer
                  %s536 = sadd.s32 1, %s532
                $region129: #{_lambda_.1} parent=122 // loop_footer_branch
                  %531 = sbr.rel target = $region125
                $region130: #{_lambda_.1} parent=122 // loop_exit
                  _
              $region123: #{_lambda_.1} parent=107 // pred_fallthru
                _
              // Predicated region
              $region131: #{_lambda_.1} parent=107 // pred_check
                _
              $region132: #{_lambda_.1} parent=107 // pred_check_branch
                %544 = sbr.rel target = $region134
              $region133: #{_lambda_.1} parent=107 // pred_region
                _
              $region134: #{_lambda_.1} parent=107 // pred_fallthru
                _
            $region108: #{_lambda_.1} parent=103 // pred_fallthru
              _
            // Predicated region
            $region109: #{_lambda_.1} parent=103 // pred_check
              _
            $region110: #{_lambda_.1} parent=103 // pred_check_branch
              %514 = sbr.rel target = $region112
            $region111: #{_lambda_.1} parent=103 // pred_region
              %s516 = ssub.s32 256, 1
              loop: start=0, step=1, limit=1
              $region113: #{_lambda_.1} parent=111 // loop_pre_header
                _
              $region114: #{_lambda_.1} parent=111 // loop_header
                %s518 = sphi 0, %s522
                %p519 = scmp.ge.s32.totalorder %s518, 1
                %s523 = sphi %s508, %s508
                %s524 = sphi %s505, %s505
              $region115: #{_lambda_.1} parent=111 // loop_header_branch
                %521 = sbr.rel (%p519) target = $region119
              $region116: #{_lambda_.1} parent=111 // loop_body
                %v525 = vld [vmem:[%s523] sm:%s516]
                %526 = vst [vmem:[%s524] sm:%s516] %v525
                %v527 = vld [vmem:[%s523 + $0x20] sm:%s516]
                %528 = vst [vmem:[%s524 + $0x8] sm:%s516] %v527
              $region117: #{_lambda_.1} parent=111 // loop_footer
                %s522 = sadd.s32 1, %s518
              $region118: #{_lambda_.1} parent=111 // loop_footer_branch
                %517 = sbr.rel target = $region114
              $region119: #{_lambda_.1} parent=111 // loop_exit
                _
            $region112: #{_lambda_.1} parent=103 // pred_fallthru
              _
          $region104: #{_lambda_.1} parent=99 // pred_fallthru
            _
          %545 = vnop
        $region100: #{_lambda_.1} parent=23 // pred_fallthru
          _
      $region24: #{_lambda_.1} parent=5 // pred_fallthru
        _
      %p546 = scmp.le.s32.totalorder 1, %s11
      %p547 = scmp.lt.s32.totalorder %s11, 5
      %p548 = pnand %p546, %p547
      %p549 = pneg %p548
      // Predicated region
      $region135: #{_lambda_.1} parent=5 // pred_check
        _
      $region136: #{_lambda_.1} parent=5 // pred_check_branch
        %551 = sbr.rel (%p548) target = $region138
      $region137: #{_lambda_.1} parent=5 // pred_region
        %s552 = ssub.s32 %s11, 1
        %s553 = sand.u32 %s66, 1
        %s554 = sand.u32 %s66, 1
        %s555 = smul.addr %s554, 456
        %s556 = scalar_lea.vmem [#allocation2], %s555
        // Predicated region
        $region139: #{_lambda_.1} parent=137 // pred_check
          %p557 = pneg %p79
        $region140: #{_lambda_.1} parent=137 // pred_check_branch
          %559 = sbr.rel (%p557) target = $region142
        $region141: #{_lambda_.1} parent=137 // pred_region
          _
        $region142: #{_lambda_.1} parent=137 // pred_fallthru
          _
        %s560 = sand.u32 %s92, 1
        %s561 = sand.u32 %s92, 1
        %s562 = smul.addr %s561, 6
        %s563 = scalar_lea.vmem [#allocation3], %s562
        // Predicated region
        $region143: #{_lambda_.1} parent=137 // pred_check
          %p564 = pneg %p105
        $region144: #{_lambda_.1} parent=137 // pred_check_branch
          %566 = sbr.rel (%p564) target = $region146
        $region145: #{_lambda_.1} parent=137 // pred_region
          _
        $region146: #{_lambda_.1} parent=137 // pred_fallthru
          _
        %s567 = sand.u32 %s118, 1
        %s568 = sand.u32 %s118, 1
        %s569 = smul.addr %s568, 16
        %s570 = scalar_lea.vmem [#allocation4], %s569
        // Predicated region
        $region147: #{_lambda_.1} parent=137 // pred_check
          %p571 = pneg %p131
        $region148: #{_lambda_.1} parent=137 // pred_check_branch
          %573 = sbr.rel (%p571) target = $region150
        $region149: #{_lambda_.1} parent=137 // pred_region
          _
        $region150: #{_lambda_.1} parent=137 // pred_fallthru
          _
        %p574 = pneg %p32
        %p575 = pneg %p29
        %p576 = pneg %p53
        %p577 = pneg %p50
        %s578 = sand.u32 %s66, 1
        %s579 = sand.u32 %s66, 1
        %s580 = smul.addr %s579, 456
        %s581 = scalar_lea.vmem [#allocation2], %s580
        %p582 = pneg %p79
        %p583 = pneg %p76
        %s584 = sand.u32 %s92, 1
        %s585 = sand.u32 %s92, 1
        %s586 = smul.addr %s585, 6
        %s587 = scalar_lea.vmem [#allocation3], %s586
        %p588 = pneg %p105
        %p589 = pneg %p102
        %s590 = sand.u32 %s118, 1
        %s591 = sand.u32 %s118, 1
        %s592 = smul.addr %s591, 16
        %s593 = scalar_lea.vmem [#allocation4], %s592
        %p594 = pneg %p131
        %p595 = pneg %p128
        %p596 = pneg %p157
        %p597 = pneg %p154
        %s598 = sand.u32 %s144, 1
        %s599 = sand.u32 %s144, 1
        %s600 = smul.addr %s599, 12
        %s601 = scalar_lea.vmem [#allocation5], %s600
        %s602 = smul.u32 2, %s16
        %s603 = smul.u32 2, %s16
        %s604 = smul.u32 2, %s16
        %s605 = smul.u32 2, %s16
        %v607 = vld [vmem:[%s0] sm:$0xf]
        %v610 = vunpack.c.l.s4 1983009808
        %v611 = vunpack.c.0.s8 %v610
        %v612 = vlaneseq
        %v613 = vshrl.u32 %v612, 7
        %v614 = vsub.s32 %v611, %v613
        %v615 = vrot.slane %v607, %v614
        %v616 = vcombine.high %v615, %v615
        %v619 = vpack.c.bf16 %v615, %v615
        %v620 = vpack.c.bf16 %v616, %v616
        %v621 = vld [vmem:[%s1] sm:$0xff]
        %v622 = vld [vmem:[%s1 + $0x8] sm:$0xff]
        %v623 = vld [vmem:[%s1 + $0x10] sm:$0xff]
        %v624 = vpack.c.bf16 %v622, %v621
        %v625 = vpack.c.bf16 %v623, %v623
        %v626 = vld [vmem:[%s570] sm:$0xff]
        %v627 = vld [vmem:[%s570 + $0x8] sm:$0xff]
        %v630 = vunpack.c.l.b16 %v626
        %v631 = vunpack.c.h.b16 %v626
        %v632 = vunpack.c.l.b16 %v627
        %v633 = vunpack.c.h.b16 %v627
        %v634 = vpack.c.b16 %v632, %v630
        %v635 = vpack.c.b16 %v633, %v631
        %vm638 = vcmask 130048
        %v640 = vsel %vm638, %v624, 0
        %v643 = vsel %vm638, %v625, 0
        %645 = vmatprep.subr.bf16.mxu0 0
        %646 = vmatpush1.bf16.msra.mxu0 0
        %647 = vmatprep.subr.bf16.mxu0 0
        %648 = vmatpush1.bf16.msra.mxu0 0
        %649 = vmatprep.subr.bf16.mxu0 0
        %650 = vmatpush1.bf16.msra.mxu0 0
        %651 = vmatprep.subr.bf16.mxu0 0
        %652 = vmatpush1.bf16.msra.mxu0 0
        %653 = vmatprep.subr.bf16.mxu0 0
        %654 = vmatpush1.bf16.msra.mxu0 0
        %655 = vmatprep.subr.bf16.mxu0 0
        %656 = vmatpush1.bf16.msra.mxu0 0
        %657 = vmatprep.subr.bf16.mxu0 0
        %658 = vmatpush1.bf16.msra.mxu0 0
        %659 = vmatprep.subr.bf16.mxu0 %v635
        %660 = vmatpush1.bf16.msra.mxu0 %v634
        %661 = vmatprep.subr.bf16.mxu0 0
        %662 = vmatpush2.bf16.msra.mxu0 0
        %663 = vmatprep.subr.bf16.mxu0 0
        %664 = vmatpush2.bf16.msra.mxu0 0
        %665 = vmatprep.subr.bf16.mxu0 0
        %666 = vmatpush2.bf16.msra.mxu0 0
        %667 = vmatprep.subr.bf16.mxu0 0
        %668 = vmatpush2.bf16.msra.mxu0 0
        %669 = vmatprep.subr.bf16.mxu0 0
        %670 = vmatpush2.bf16.msra.mxu0 0
        %671 = vmatprep.subr.bf16.mxu0 0
        %672 = vmatpush2.bf16.msra.mxu0 0
        %673 = vmatprep.subr.bf16.mxu0 0
        %674 = vmatpush2.bf16.msra.mxu0 0
        %675 = vmatprep.subr.bf16.mxu0 0
        %676 = vmatpush2.bf16.msra.mxu0 0
        %677 = vmatprep.mubr.bf16.mxu0 0
        %678 = vmatmul.mubr.bf16.gmra.mxu0 %v640
        %v679 = vpop.f32.mrf.mxu0
        %v680 = vadd.f32 0.0, %v679
        %v681 = vpop.f32.mrf.mxu0
        %v682 = vadd.f32 0.0, %v681
        %v683 = vpop.f32.mrf.mxu0
        %v684 = vadd.f32 0.0, %v683
        %v685 = vpop.f32.mrf.mxu0
        %v686 = vadd.f32 0.0, %v685
        %687 = vmatprep.mubr.bf16.mxu0 0
        %688 = vmatmul.mubr.bf16.gmra.mxu0 %v643
        %v689 = vpop.f32.mrf.mxu0
        %v690 = vadd.f32 0.0, %v689
        %v691 = vpop.f32.mrf.mxu0
        %v692 = vadd.f32 0.0, %v691
        %v693 = vpop.f32.mrf.mxu0
        %v694 = vpop.f32.mrf.mxu0
        %695 = vdwg.mxu0
        %v696 = vld [vmem:[%s556] sm:$0xff]
        %v697 = vld [vmem:[%s556 + $0x8] sm:$0xff]
        %v698 = vld [vmem:[%s556 + $0x10] sm:$0xff]
        %v699 = vld [vmem:[%s556 + $0x18] sm:$0xff]
        %v700 = vld [vmem:[%s556 + $0x20] sm:$0xff]
        %v701 = vld [vmem:[%s556 + $0x28] sm:$0xff]
        %v702 = vld [vmem:[%s556 + $0x30] sm:$0xff]
        %v703 = vld [vmem:[%s556 + $0x38] sm:$0xff]
        %v704 = vld [vmem:[%s556 + $0x40] sm:$0xff]
        %v705 = vld [vmem:[%s556 + $0x48] sm:$0xff]
        %v706 = vld [vmem:[%s556 + $0x50] sm:$0xff]
        %v707 = vld [vmem:[%s556 + $0x58] sm:$0xff]
        %v708 = vld [vmem:[%s556 + $0x60] sm:$0xff]
        %v709 = vld [vmem:[%s556 + $0x68] sm:$0xff]
        %v710 = vld [vmem:[%s556 + $0x70] sm:$0xff]
        %v711 = vld [vmem:[%s556 + $0x78] sm:$0xff]
        %v712 = vld [vmem:[%s556 + $0x80] sm:$0xff]
        %v713 = vld [vmem:[%s556 + $0x88] sm:$0xff]
        %v714 = vld [vmem:[%s556 + $0x90] sm:$0x11]
        %v715 = vld [vmem:[%s563] sm:$0x3]
        %v717 = vlaneseq
        %v718 = vshrl.u32 %v717, 7
        %v719 = vsub.s32 0, %v718
        %v720 = vrot.slane %v715, %v719
        %v721 = vlaneseq
        %v722 = vshrl.u32 %v721, 7
        %v723 = vsub.s32 1, %v722
        %v724 = vrot.slane %v715, %v723
        %v746 = vunpack.c.l.b16 %v696
        %v747 = vunpack.c.h.b16 %v696
        %v748 = vunpack.c.l.b16 %v697
        %v749 = vunpack.c.h.b16 %v697
        %v750 = vunpack.c.l.b16 %v698
        %v751 = vunpack.c.h.b16 %v698
        %v752 = vunpack.c.l.b16 %v699
        %v753 = vunpack.c.h.b16 %v699
        %v754 = vunpack.c.l.b16 %v700
        %v755 = vunpack.c.h.b16 %v700
        %v756 = vunpack.c.l.b16 %v701
        %v757 = vunpack.c.h.b16 %v701
        %v758 = vunpack.c.l.b16 %v702
        %v759 = vunpack.c.h.b16 %v702
        %v760 = vunpack.c.l.b16 %v703
        %v761 = vunpack.c.h.b16 %v703
        %v762 = vunpack.c.l.b16 %v704
        %v763 = vunpack.c.h.b16 %v704
        %v764 = vunpack.c.l.b16 %v705
        %v765 = vunpack.c.h.b16 %v705
        %v766 = vunpack.c.l.b16 %v706
        %v767 = vunpack.c.h.b16 %v706
        %v768 = vunpack.c.l.b16 %v707
        %v769 = vunpack.c.h.b16 %v707
        %v770 = vunpack.c.l.b16 %v708
        %v771 = vunpack.c.h.b16 %v708
        %v772 = vunpack.c.l.b16 %v709
        %v773 = vunpack.c.h.b16 %v709
        %v774 = vunpack.c.l.b16 %v710
        %v775 = vunpack.c.h.b16 %v710
        %v776 = vunpack.c.l.b16 %v711
        %v777 = vunpack.c.h.b16 %v711
        %v778 = vunpack.c.l.b16 %v712
        %v779 = vunpack.c.h.b16 %v712
        %v780 = vunpack.c.l.b16 %v713
        %v781 = vunpack.c.h.b16 %v713
        %v782 = vunpack.c.l.b16 %v714
        %v783 = vunpack.c.h.b16 %v714
        %v784 = vpack.c.b16 %v748, %v746
        %v785 = vpack.c.b16 %v749, %v747
        %v786 = vpack.c.b16 %v752, %v750
        %v787 = vpack.c.b16 %v753, %v751
        %v788 = vpack.c.b16 %v756, %v754
        %v789 = vpack.c.b16 %v757, %v755
        %v790 = vpack.c.b16 %v760, %v758
        %v791 = vpack.c.b16 %v761, %v759
        %v792 = vpack.c.b16 %v764, %v762
        %v793 = vpack.c.b16 %v765, %v763
        %v794 = vpack.c.b16 %v768, %v766
        %v795 = vpack.c.b16 %v769, %v767
        %v796 = vpack.c.b16 %v772, %v770
        %v797 = vpack.c.b16 %v773, %v771
        %v798 = vpack.c.b16 %v776, %v774
        %v799 = vpack.c.b16 %v777, %v775
        %v800 = vpack.c.b16 %v780, %v778
        %v801 = vpack.c.b16 %v781, %v779
        %v802 = vpack.c.b16 %v782, %v782
        %v803 = vpack.c.b16 %v783, %v783
        %vm822 = vcmask 138240
        %v824 = vsel %vm822, %v620, 0
        %vm826 = vcmask 1040384
        %v827 = vsel 0, 4294967295, 65535
        %v828 = vsel %vm826, %v827, 0
        %v830 = vand.u32 %v802, %v828
        %v833 = vand.u32 %v803, %v828
        %835 = vmatprep.subr.bf16.mxu0 %v799
        %836 = vmatpush1.bf16.msra.mxu0 %v798
        %837 = vmatprep.subr.bf16.mxu0 %v797
        %838 = vmatpush1.bf16.msra.mxu0 %v796
        %839 = vmatprep.subr.bf16.mxu0 %v795
        %840 = vmatpush1.bf16.msra.mxu0 %v794
        %841 = vmatprep.subr.bf16.mxu0 %v793
        %842 = vmatpush1.bf16.msra.mxu0 %v792
        %843 = vmatprep.subr.bf16.mxu0 %v791
        %844 = vmatpush1.bf16.msra.mxu0 %v790
        %845 = vmatprep.subr.bf16.mxu0 %v789
        %846 = vmatpush1.bf16.msra.mxu0 %v788
        %847 = vmatprep.subr.bf16.mxu0 %v787
        %848 = vmatpush1.bf16.msra.mxu0 %v786
        %849 = vmatprep.subr.bf16.mxu0 %v785
        %850 = vmatpush1.bf16.msra.mxu0 %v784
        %851 = vmatprep.subr.bf16.mxu0 0
        %852 = vmatpush2.bf16.msra.mxu0 0
        %853 = vmatprep.subr.bf16.mxu0 0
        %854 = vmatpush2.bf16.msra.mxu0 0
        %855 = vmatprep.subr.bf16.mxu0 0
        %856 = vmatpush2.bf16.msra.mxu0 0
        %857 = vmatprep.subr.bf16.mxu0 0
        %858 = vmatpush2.bf16.msra.mxu0 0
        %859 = vmatprep.subr.bf16.mxu0 0
        %860 = vmatpush2.bf16.msra.mxu0 0
        %861 = vmatprep.subr.bf16.mxu0 0
        %862 = vmatpush2.bf16.msra.mxu0 0
        %863 = vmatprep.subr.bf16.mxu0 %v833
        %864 = vmatpush2.bf16.msra.mxu0 %v830
        %865 = vmatprep.subr.bf16.mxu0 %v801
        %866 = vmatpush2.bf16.msra.mxu0 %v800
        %867 = vmatprep.mubr.bf16.mxu0 %v824
        %868 = vmatmul.mubr.bf16.gmra.mxu0 %v619
        %v869 = vpop.f32.mrf.mxu0
        %v870 = vadd.f32 %v720, %v869
        %v871 = vpop.f32.mrf.mxu0
        %v872 = vadd.f32 %v724, %v871
        %v873 = vpop.f32.mrf.mxu0
        %v874 = vpop.f32.mrf.mxu0
        %875 = vdwg.mxu0
        %s876 = scalar_lea.vmem %s556, 152 [#allocation2]
        %v877 = vld [vmem:[%s876] sm:$0xff]
        %v878 = vld [vmem:[%s876 + $0x8] sm:$0xff]
        %v879 = vld [vmem:[%s876 + $0x10] sm:$0xff]
        %v880 = vld [vmem:[%s876 + $0x18] sm:$0xff]
        %v881 = vld [vmem:[%s876 + $0x20] sm:$0xff]
        %v882 = vld [vmem:[%s876 + $0x28] sm:$0xff]
        %v883 = vld [vmem:[%s876 + $0x30] sm:$0xff]
        %v884 = vld [vmem:[%s876 + $0x38] sm:$0xff]
        %v885 = vld [vmem:[%s876 + $0x40] sm:$0xff]
        %v886 = vld [vmem:[%s876 + $0x48] sm:$0xff]
        %v887 = vld [vmem:[%s876 + $0x50] sm:$0xff]
        %v888 = vld [vmem:[%s876 + $0x58] sm:$0xff]
        %v889 = vld [vmem:[%s876 + $0x60] sm:$0xff]
        %v890 = vld [vmem:[%s876 + $0x68] sm:$0xff]
        %v891 = vld [vmem:[%s876 + $0x70] sm:$0xff]
        %v892 = vld [vmem:[%s876 + $0x78] sm:$0xff]
        %v893 = vld [vmem:[%s876 + $0x80] sm:$0xff]
        %v894 = vld [vmem:[%s876 + $0x88] sm:$0xff]
        %v895 = vld [vmem:[%s876 + $0x90] sm:$0x11]
        %s896 = scalar_lea.vmem %s563, 2 [#allocation3]
        %v897 = vld [vmem:[%s896] sm:$0x3]
        %v899 = vlaneseq
        %v900 = vshrl.u32 %v899, 7
        %v901 = vsub.s32 0, %v900
        %v902 = vrot.slane %v897, %v901
        %v903 = vlaneseq
        %v904 = vshrl.u32 %v903, 7
        %v905 = vsub.s32 1, %v904
        %v906 = vrot.slane %v897, %v905
        %v928 = vunpack.c.l.b16 %v877
        %v929 = vunpack.c.h.b16 %v877
        %v930 = vunpack.c.l.b16 %v878
        %v931 = vunpack.c.h.b16 %v878
        %v932 = vunpack.c.l.b16 %v879
        %v933 = vunpack.c.h.b16 %v879
        %v934 = vunpack.c.l.b16 %v880
        %v935 = vunpack.c.h.b16 %v880
        %v936 = vunpack.c.l.b16 %v881
        %v937 = vunpack.c.h.b16 %v881
        %v938 = vunpack.c.l.b16 %v882
        %v939 = vunpack.c.h.b16 %v882
        %v940 = vunpack.c.l.b16 %v883
        %v941 = vunpack.c.h.b16 %v883
        %v942 = vunpack.c.l.b16 %v884
        %v943 = vunpack.c.h.b16 %v884
        %v944 = vunpack.c.l.b16 %v885
        %v945 = vunpack.c.h.b16 %v885
        %v946 = vunpack.c.l.b16 %v886
        %v947 = vunpack.c.h.b16 %v886
        %v948 = vunpack.c.l.b16 %v887
        %v949 = vunpack.c.h.b16 %v887
        %v950 = vunpack.c.l.b16 %v888
        %v951 = vunpack.c.h.b16 %v888
        %v952 = vunpack.c.l.b16 %v889
        %v953 = vunpack.c.h.b16 %v889
        %v954 = vunpack.c.l.b16 %v890
        %v955 = vunpack.c.h.b16 %v890
        %v956 = vunpack.c.l.b16 %v891
        %v957 = vunpack.c.h.b16 %v891
        %v958 = vunpack.c.l.b16 %v892
        %v959 = vunpack.c.h.b16 %v892
        %v960 = vunpack.c.l.b16 %v893
        %v961 = vunpack.c.h.b16 %v893
        %v962 = vunpack.c.l.b16 %v894
        %v963 = vunpack.c.h.b16 %v894
        %v964 = vunpack.c.l.b16 %v895
        %v965 = vunpack.c.h.b16 %v895
        %v966 = vpack.c.b16 %v930, %v928
        %v967 = vpack.c.b16 %v931, %v929
        %v968 = vpack.c.b16 %v934, %v932
        %v969 = vpack.c.b16 %v935, %v933
        %v970 = vpack.c.b16 %v938, %v936
        %v971 = vpack.c.b16 %v939, %v937
        %v972 = vpack.c.b16 %v942, %v940
        %v973 = vpack.c.b16 %v943, %v941
        %v974 = vpack.c.b16 %v946, %v944
        %v975 = vpack.c.b16 %v947, %v945
        %v976 = vpack.c.b16 %v950, %v948
        %v977 = vpack.c.b16 %v951, %v949
        %v978 = vpack.c.b16 %v954, %v952
        %v979 = vpack.c.b16 %v955, %v953
        %v980 = vpack.c.b16 %v958, %v956
        %v981 = vpack.c.b16 %v959, %v957
        %v982 = vpack.c.b16 %v962, %v960
        %v983 = vpack.c.b16 %v963, %v961
        %v984 = vpack.c.b16 %v964, %v964
        %v985 = vpack.c.b16 %v965, %v965
        %v1005 = vand.u32 %v984, %v828
        %v1008 = vand.u32 %v985, %v828
        %1010 = vmatprep.subr.bf16.mxu0 %v981
        %1011 = vmatpush1.bf16.msra.mxu0 %v980
        %1012 = vmatprep.subr.bf16.mxu0 %v979
        %1013 = vmatpush1.bf16.msra.mxu0 %v978
        %1014 = vmatprep.subr.bf16.mxu0 %v977
        %1015 = vmatpush1.bf16.msra.mxu0 %v976
        %1016 = vmatprep.subr.bf16.mxu0 %v975
        %1017 = vmatpush1.bf16.msra.mxu0 %v974
        %1018 = vmatprep.subr.bf16.mxu0 %v973
        %1019 = vmatpush1.bf16.msra.mxu0 %v972
        %1020 = vmatprep.subr.bf16.mxu0 %v971
        %1021 = vmatpush1.bf16.msra.mxu0 %v970
        %1022 = vmatprep.subr.bf16.mxu0 %v969
        %1023 = vmatpush1.bf16.msra.mxu0 %v968
        %1024 = vmatprep.subr.bf16.mxu0 %v967
        %1025 = vmatpush1.bf16.msra.mxu0 %v966
        %1026 = vmatprep.subr.bf16.mxu0 0
        %1027 = vmatpush2.bf16.msra.mxu0 0
        %1028 = vmatprep.subr.bf16.mxu0 0
        %1029 = vmatpush2.bf16.msra.mxu0 0
        %1030 = vmatprep.subr.bf16.mxu0 0
        %1031 = vmatpush2.bf16.msra.mxu0 0
        %1032 = vmatprep.subr.bf16.mxu0 0
        %1033 = vmatpush2.bf16.msra.mxu0 0
        %1034 = vmatprep.subr.bf16.mxu0 0
        %1035 = vmatpush2.bf16.msra.mxu0 0
        %1036 = vmatprep.subr.bf16.mxu0 0
        %1037 = vmatpush2.bf16.msra.mxu0 0
        %1038 = vmatprep.subr.bf16.mxu0 %v1008
        %1039 = vmatpush2.bf16.msra.mxu0 %v1005
        %1040 = vmatprep.subr.bf16.mxu0 %v983
        %1041 = vmatpush2.bf16.msra.mxu0 %v982
        %1042 = vmatprep.mubr.bf16.mxu0 %v824
        %1043 = vmatmul.mubr.bf16.gmra.mxu0 %v619
        %v1044 = vpop.f32.mrf.mxu0
        %v1045 = vadd.f32 %v902, %v1044
        %v1046 = vpop.f32.mrf.mxu0
        %v1047 = vadd.f32 %v906, %v1046
        %v1048 = vpop.f32.mrf.mxu0
        %v1049 = vpop.f32.mrf.mxu0
        %1050 = vdwg.mxu0
        %s1051 = scalar_lea.vmem %s556, 304 [#allocation2]
        %v1052 = vld [vmem:[%s1051] sm:$0xff]
        %v1053 = vld [vmem:[%s1051 + $0x8] sm:$0xff]
        %v1054 = vld [vmem:[%s1051 + $0x10] sm:$0xff]
        %v1055 = vld [vmem:[%s1051 + $0x18] sm:$0xff]
        %v1056 = vld [vmem:[%s1051 + $0x20] sm:$0xff]
        %v1057 = vld [vmem:[%s1051 + $0x28] sm:$0xff]
        %v1058 = vld [vmem:[%s1051 + $0x30] sm:$0xff]
        %v1059 = vld [vmem:[%s1051 + $0x38] sm:$0xff]
        %v1060 = vld [vmem:[%s1051 + $0x40] sm:$0xff]
        %v1061 = vld [vmem:[%s1051 + $0x48] sm:$0xff]
        %v1062 = vld [vmem:[%s1051 + $0x50] sm:$0xff]
        %v1063 = vld [vmem:[%s1051 + $0x58] sm:$0xff]
        %v1064 = vld [vmem:[%s1051 + $0x60] sm:$0xff]
        %v1065 = vld [vmem:[%s1051 + $0x68] sm:$0xff]
        %v1066 = vld [vmem:[%s1051 + $0x70] sm:$0xff]
        %v1067 = vld [vmem:[%s1051 + $0x78] sm:$0xff]
        %v1068 = vld [vmem:[%s1051 + $0x80] sm:$0xff]
        %v1069 = vld [vmem:[%s1051 + $0x88] sm:$0xff]
        %v1070 = vld [vmem:[%s1051 + $0x90] sm:$0x11]
        %s1071 = scalar_lea.vmem %s563, 4 [#allocation3]
        %v1072 = vld [vmem:[%s1071] sm:$0x3]
        %v1074 = vlaneseq
        %v1075 = vshrl.u32 %v1074, 7
        %v1076 = vsub.s32 0, %v1075
        %v1077 = vrot.slane %v1072, %v1076
        %v1078 = vlaneseq
        %v1079 = vshrl.u32 %v1078, 7
        %v1080 = vsub.s32 1, %v1079
        %v1081 = vrot.slane %v1072, %v1080
        %v1103 = vunpack.c.l.b16 %v1052
        %v1104 = vunpack.c.h.b16 %v1052
        %v1105 = vunpack.c.l.b16 %v1053
        %v1106 = vunpack.c.h.b16 %v1053
        %v1107 = vunpack.c.l.b16 %v1054
        %v1108 = vunpack.c.h.b16 %v1054
        %v1109 = vunpack.c.l.b16 %v1055
        %v1110 = vunpack.c.h.b16 %v1055
        %v1111 = vunpack.c.l.b16 %v1056
        %v1112 = vunpack.c.h.b16 %v1056
        %v1113 = vunpack.c.l.b16 %v1057
        %v1114 = vunpack.c.h.b16 %v1057
        %v1115 = vunpack.c.l.b16 %v1058
        %v1116 = vunpack.c.h.b16 %v1058
        %v1117 = vunpack.c.l.b16 %v1059
        %v1118 = vunpack.c.h.b16 %v1059
        %v1119 = vunpack.c.l.b16 %v1060
        %v1120 = vunpack.c.h.b16 %v1060
        %v1121 = vunpack.c.l.b16 %v1061
        %v1122 = vunpack.c.h.b16 %v1061
        %v1123 = vunpack.c.l.b16 %v1062
        %v1124 = vunpack.c.h.b16 %v1062
        %v1125 = vunpack.c.l.b16 %v1063
        %v1126 = vunpack.c.h.b16 %v1063
        %v1127 = vunpack.c.l.b16 %v1064
        %v1128 = vunpack.c.h.b16 %v1064
        %v1129 = vunpack.c.l.b16 %v1065
        %v1130 = vunpack.c.h.b16 %v1065
        %v1131 = vunpack.c.l.b16 %v1066
        %v1132 = vunpack.c.h.b16 %v1066
        %v1133 = vunpack.c.l.b16 %v1067
        %v1134 = vunpack.c.h.b16 %v1067
        %v1135 = vunpack.c.l.b16 %v1068
        %v1136 = vunpack.c.h.b16 %v1068
        %v1137 = vunpack.c.l.b16 %v1069
        %v1138 = vunpack.c.h.b16 %v1069
        %v1139 = vunpack.c.l.b16 %v1070
        %v1140 = vunpack.c.h.b16 %v1070
        %v1141 = vpack.c.b16 %v1105, %v1103
        %v1142 = vpack.c.b16 %v1106, %v1104
        %v1143 = vpack.c.b16 %v1109, %v1107
        %v1144 = vpack.c.b16 %v1110, %v1108
        %v1145 = vpack.c.b16 %v1113, %v1111
        %v1146 = vpack.c.b16 %v1114, %v1112
        %v1147 = vpack.c.b16 %v1117, %v1115
        %v1148 = vpack.c.b16 %v1118, %v1116
        %v1149 = vpack.c.b16 %v1121, %v1119
        %v1150 = vpack.c.b16 %v1122, %v1120
        %v1151 = vpack.c.b16 %v1125, %v1123
        %v1152 = vpack.c.b16 %v1126, %v1124
        %v1153 = vpack.c.b16 %v1129, %v1127
        %v1154 = vpack.c.b16 %v1130, %v1128
        %v1155 = vpack.c.b16 %v1133, %v1131
        %v1156 = vpack.c.b16 %v1134, %v1132
        %v1157 = vpack.c.b16 %v1137, %v1135
        %v1158 = vpack.c.b16 %v1138, %v1136
        %v1159 = vpack.c.b16 %v1139, %v1139
        %v1160 = vpack.c.b16 %v1140, %v1140
        %v1180 = vand.u32 %v1159, %v828
        %v1183 = vand.u32 %v1160, %v828
        %1185 = vmatprep.subr.bf16.mxu0 %v1156
        %1186 = vmatpush1.bf16.msra.mxu0 %v1155
        %1187 = vmatprep.subr.bf16.mxu0 %v1154
        %1188 = vmatpush1.bf16.msra.mxu0 %v1153
        %1189 = vmatprep.subr.bf16.mxu0 %v1152
        %1190 = vmatpush1.bf16.msra.mxu0 %v1151
        %1191 = vmatprep.subr.bf16.mxu0 %v1150
        %1192 = vmatpush1.bf16.msra.mxu0 %v1149
        %1193 = vmatprep.subr.bf16.mxu0 %v1148
        %1194 = vmatpush1.bf16.msra.mxu0 %v1147
        %1195 = vmatprep.subr.bf16.mxu0 %v1146
        %1196 = vmatpush1.bf16.msra.mxu0 %v1145
        %1197 = vmatprep.subr.bf16.mxu0 %v1144
        %1198 = vmatpush1.bf16.msra.mxu0 %v1143
        %1199 = vmatprep.subr.bf16.mxu0 %v1142
        %1200 = vmatpush1.bf16.msra.mxu0 %v1141
        %1201 = vmatprep.subr.bf16.mxu0 0
        %1202 = vmatpush2.bf16.msra.mxu0 0
        %1203 = vmatprep.subr.bf16.mxu0 0
        %1204 = vmatpush2.bf16.msra.mxu0 0
        %1205 = vmatprep.subr.bf16.mxu0 0
        %1206 = vmatpush2.bf16.msra.mxu0 0
        %1207 = vmatprep.subr.bf16.mxu0 0
        %1208 = vmatpush2.bf16.msra.mxu0 0
        %1209 = vmatprep.subr.bf16.mxu0 0
        %1210 = vmatpush2.bf16.msra.mxu0 0
        %1211 = vmatprep.subr.bf16.mxu0 0
        %1212 = vmatpush2.bf16.msra.mxu0 0
        %1213 = vmatprep.subr.bf16.mxu0 %v1183
        %1214 = vmatpush2.bf16.msra.mxu0 %v1180
        %1215 = vmatprep.subr.bf16.mxu0 %v1158
        %1216 = vmatpush2.bf16.msra.mxu0 %v1157
        %1217 = vmatprep.mubr.bf16.mxu0 %v824
        %1218 = vmatmul.mubr.bf16.gmra.mxu0 %v619
        %v1219 = vpop.f32.mrf.mxu0
        %v1220 = vadd.f32 %v1077, %v1219
        %v1221 = vpop.f32.mrf.mxu0
        %v1222 = vadd.f32 %v1081, %v1221
        %v1223 = vpop.f32.mrf.mxu0
        %v1224 = vpop.f32.mrf.mxu0
        %1225 = vdwg.mxu0
        %v1226 = vmul.f32 %v680, %v870
        %v1227 = vmul.f32 %v682, %v872
        %v1230 = vrot.slane %v1226, 6
        %v1231 = vrot.slane %v1227, 6
        %v1234 = vadd.f32 %v690, %v1230
        %v1235 = vadd.f32 %v692, %v1231
        %v1238 = vrot.slane %v1045, 2
        %v1239 = vrot.slane %v1047, 2
        %v1242 = vmul.f32 %v680, %v1238
        %v1243 = vmul.f32 %v682, %v1239
        %v1246 = vrot.slane %v1242, 4
        %v1247 = vrot.slane %v1243, 4
        %v1250 = vadd.f32 %v1234, %v1246
        %v1251 = vadd.f32 %v1235, %v1247
        %v1254 = vrot.slane %v1220, 4
        %v1255 = vrot.slane %v1222, 4
        %v1258 = vmul.f32 %v684, %v1254
        %v1259 = vmul.f32 %v686, %v1255
        %v1262 = vrot.slane %v1258, 2
        %v1263 = vrot.slane %v1259, 2
        %v1266 = vadd.f32 %v1250, %v1262
        %v1267 = vadd.f32 %v1251, %v1263
        %v1270 = vcombine.low %v1266, %v1267
        %v1272 = vunpack.c.l.s4 1983009808
        %v1273 = vunpack.c.0.s8 %v1272
        %v1274 = vlaneseq
        %v1275 = vshrl.u32 %v1274, 7
        %v1276 = vsub.s32 %v1273, %v1275
        %v1277 = vrot.slane %v1270, %v1276
        %v1278 = vcombine.high %v1277, %v1277
        %1280 = vst [vmem:[%s601] sm:$0xf] %v1278
        %v1283 = vrot.slane %v870, 6
        %v1284 = vrot.slane %v872, 6
        %v1287 = vmul.f32 %v680, %v1283
        %v1288 = vmul.f32 %v682, %v1284
        %v1291 = vrot.slane %v1287, 6
        %v1292 = vrot.slane %v1288, 6
        %v1295 = vadd.f32 %v690, %v1291
        %v1296 = vadd.f32 %v692, %v1292
        %v1297 = vmul.f32 %v684, %v1045
        %v1298 = vmul.f32 %v686, %v1047
        %v1301 = vrot.slane %v1297, 4
        %v1302 = vrot.slane %v1298, 4
        %v1305 = vadd.f32 %v1295, %v1301
        %v1306 = vadd.f32 %v1296, %v1302
        %v1307 = vrot.slane %v1220, 2
        %v1308 = vrot.slane %v1222, 2
        %v1311 = vmul.f32 %v684, %v1307
        %v1312 = vmul.f32 %v686, %v1308
        %v1315 = vrot.slane %v1311, 2
        %v1316 = vrot.slane %v1312, 2
        %v1319 = vadd.f32 %v1305, %v1315
        %v1320 = vadd.f32 %v1306, %v1316
        %v1323 = vcombine.high %v1319, %v1320
        %v1325 = vunpack.c.l.s4 1983009808
        %v1326 = vunpack.c.0.s8 %v1325
        %v1327 = vlaneseq
        %v1328 = vshrl.u32 %v1327, 7
        %v1329 = vsub.s32 %v1326, %v1328
        %v1330 = vrot.slane %v1323, %v1329
        %s1332 = scalar_lea.vmem %s601, 4 [#allocation5]
        %1333 = vst [vmem:[%s1332] sm:$0xf] %v1330
        %v1334 = vrot.slane %v870, 4
        %v1335 = vrot.slane %v872, 4
        %v1338 = vmul.f32 %v680, %v1334
        %v1339 = vmul.f32 %v682, %v1335
        %v1342 = vrot.slane %v1338, 6
        %v1343 = vrot.slane %v1339, 6
        %v1346 = vadd.f32 %v690, %v1342
        %v1347 = vadd.f32 %v692, %v1343
        %v1348 = vrot.slane %v1045, 6
        %v1349 = vrot.slane %v1047, 6
        %v1352 = vmul.f32 %v684, %v1348
        %v1353 = vmul.f32 %v686, %v1349
        %v1356 = vrot.slane %v1352, 4
        %v1357 = vrot.slane %v1353, 4
        %v1360 = vadd.f32 %v1346, %v1356
        %v1361 = vadd.f32 %v1347, %v1357
        %v1362 = vmul.f32 %v690, %v1220
        %v1363 = vmul.f32 %v692, %v1222
        %v1366 = vrot.slane %v1362, 2
        %v1367 = vrot.slane %v1363, 2
        %v1370 = vadd.f32 %v1360, %v1366
        %v1371 = vadd.f32 %v1361, %v1367
        %v1374 = vcombine.high %v1370, %v1371
        %v1376 = vunpack.c.l.s4 1983009808
        %v1377 = vunpack.c.0.s8 %v1376
        %v1378 = vlaneseq
        %v1379 = vshrl.u32 %v1378, 7
        %v1380 = vsub.s32 %v1377, %v1379
        %v1381 = vrot.slane %v1374, %v1380
        %v1382 = vcombine.high %v1381, %v1381
        %s1384 = scalar_lea.vmem %s601, 8 [#allocation5]
        %1385 = vst [vmem:[%s1384] sm:$0xf] %v1382
        %s1386 = sand.u32 %s144, 1
        %s1387 = sand.u32 %s144, 1
        %s1388 = smul.addr %s1387, 12
        %s1389 = scalar_lea.vmem [#allocation5], %s1388
        // Predicated region
        $region151: #{_lambda_.1} parent=137 // pred_check
          %p1390 = pneg %p154
        $region152: #{_lambda_.1} parent=137 // pred_check_branch
          %1392 = sbr.rel (%p1390) target = $region154
        $region153: #{_lambda_.1} parent=137 // pred_region
          %s1393 = smul.u32 2, %s16
          %s1394 = smul.addr %s1393, 2
          %s1395 = scalar_lea.vmem %s5, %s1394
          // Predicated region
          $region155: #{_lambda_.1} parent=153 // pred_check
            _
          $region156: #{_lambda_.1} parent=153 // pred_check_branch
            %1397 = sbr.rel (0) target = $region158
          $region157: #{_lambda_.1} parent=153 // pred_region
            // Predicated region
            $region159: #{_lambda_.1} parent=157 // pred_check
              _
            $region160: #{_lambda_.1} parent=157 // pred_check_branch
              %1399 = sbr.rel target = $region162
            $region161: #{_lambda_.1} parent=157 // pred_region
              // Predicated region
              $region174: #{_lambda_.1} parent=161 // pred_check
                _
              $region175: #{_lambda_.1} parent=161 // pred_check_branch
                %1419 = sbr.rel (0) target = $region177
              $region176: #{_lambda_.1} parent=161 // pred_region
                loop: start=0, step=1, limit=1
                $region178: #{_lambda_.1} parent=176 // loop_pre_header
                  _
                $region179: #{_lambda_.1} parent=176 // loop_header
                  %s1421 = sphi 0, %s1425
                  %p1422 = scmp.ge.s32.totalorder %s1421, 1
                  %s1426 = sphi %s1389, %s1389
                  %s1427 = sphi %s1395, %s1395
                $region180: #{_lambda_.1} parent=176 // loop_header_branch
                  %1424 = sbr.rel (%p1422) target = $region184
                $region181: #{_lambda_.1} parent=176 // loop_body
                  _
                $region182: #{_lambda_.1} parent=176 // loop_footer
                  %s1425 = sadd.s32 1, %s1421
                $region183: #{_lambda_.1} parent=176 // loop_footer_branch
                  %1420 = sbr.rel target = $region179
                $region184: #{_lambda_.1} parent=176 // loop_exit
                  _
                %s1429 = ssub.s32 16, 1
                loop: start=0, step=1, limit=1
                $region185: #{_lambda_.1} parent=176 // loop_pre_header
                  _
                $region186: #{_lambda_.1} parent=176 // loop_header
                  %s1431 = sphi 0, %s1435
                  %p1432 = scmp.ge.s32.totalorder %s1431, 1
                  %s1436 = sphi %s1389, %s1389
                  %s1437 = sphi %s1395, %s1395
                $region187: #{_lambda_.1} parent=176 // loop_header_branch
                  %1434 = sbr.rel (%p1432) target = $region191
                $region188: #{_lambda_.1} parent=176 // loop_body
                  %v1438 = vld [vmem:[%s1436] sm:%s1429]
                  %1439 = vst [vmem:[%s1437] sm:%s1429] %v1438
                  %v1440 = vld [vmem:[%s1436 + $0x4] sm:%s1429]
                  %1441 = vst [vmem:[%s1437 + $0x10] sm:%s1429] %v1440
                  %v1442 = vld [vmem:[%s1436 + $0x8] sm:%s1429]
                  %1443 = vst [vmem:[%s1437 + $0x20] sm:%s1429] %v1442
                $region189: #{_lambda_.1} parent=176 // loop_footer
                  %s1435 = sadd.s32 1, %s1431
                $region190: #{_lambda_.1} parent=176 // loop_footer_branch
                  %1430 = sbr.rel target = $region186
                $region191: #{_lambda_.1} parent=176 // loop_exit
                  _
              $region177: #{_lambda_.1} parent=161 // pred_fallthru
                _
            $region162: #{_lambda_.1} parent=157 // pred_fallthru
              _
            // Predicated region
            $region163: #{_lambda_.1} parent=157 // pred_check
              _
            $region164: #{_lambda_.1} parent=157 // pred_check_branch
              %1401 = sbr.rel (0) target = $region166
            $region165: #{_lambda_.1} parent=157 // pred_region
              %s1403 = ssub.s32 16, 1
              loop: start=0, step=1, limit=1
              $region167: #{_lambda_.1} parent=165 // loop_pre_header
                _
              $region168: #{_lambda_.1} parent=165 // loop_header
                %s1405 = sphi 0, %s1409
                %p1406 = scmp.ge.s32.totalorder %s1405, 1
                %s1410 = sphi %s1389, %s1389
                %s1411 = sphi %s1395, %s1395
              $region169: #{_lambda_.1} parent=165 // loop_header_branch
                %1408 = sbr.rel (%p1406) target = $region173
              $region170: #{_lambda_.1} parent=165 // loop_body
                %v1412 = vld [vmem:[%s1410] sm:%s1403]
                %1413 = vst [vmem:[%s1411] sm:%s1403] %v1412
                %v1414 = vld [vmem:[%s1410 + $0x4] sm:%s1403]
                %1415 = vst [vmem:[%s1411 + $0x10] sm:%s1403] %v1414
                %v1416 = vld [vmem:[%s1410 + $0x8] sm:%s1403]
                %1417 = vst [vmem:[%s1411 + $0x20] sm:%s1403] %v1416
              $region171: #{_lambda_.1} parent=165 // loop_footer
                %s1409 = sadd.s32 1, %s1405
              $region172: #{_lambda_.1} parent=165 // loop_footer_branch
                %1404 = sbr.rel target = $region168
              $region173: #{_lambda_.1} parent=165 // loop_exit
                _
            $region166: #{_lambda_.1} parent=157 // pred_fallthru
              _
          $region158: #{_lambda_.1} parent=153 // pred_fallthru
            _
          %1444 = vnop
        $region154: #{_lambda_.1} parent=137 // pred_fallthru
          _
      $region138: #{_lambda_.1} parent=5 // pred_fallthru
        _
      %p1445 = scmp.le.s32.totalorder 2, %s11
      // Predicated region
      $region192: #{_lambda_.1} parent=5 // pred_check
        %p1446 = pneg %p1445
      $region193: #{_lambda_.1} parent=5 // pred_check_branch
        %1448 = sbr.rel (%p1446) target = $region195
      $region194: #{_lambda_.1} parent=5 // pred_region
        %s1449 = ssub.s32 %s11, 2
        // Predicated region
        $region196: #{_lambda_.1} parent=194 // pred_check
          %p1450 = pneg %p160
        $region197: #{_lambda_.1} parent=194 // pred_check_branch
          %1452 = sbr.rel (%p1450) target = $region199
        $region198: #{_lambda_.1} parent=194 // pred_region
          %s1453 = sand.u32 %s145, 1
          %s1454 = sand.u32 %s145, 1
          %s1455 = smul.addr %s1454, 12
          %s1456 = scalar_lea.vmem [#allocation5], %s1455
        $region199: #{_lambda_.1} parent=194 // pred_fallthru
          _
      $region195: #{_lambda_.1} parent=5 // pred_fallthru
        _
    $region6: #{_lambda_.1} parent=1 // loop_footer
      %s15 = sadd.s32 1, %s11
    $region7: #{_lambda_.1} parent=1 // loop_footer_branch
      %10 = sbr.rel target = $region3
    $region8: #{_lambda_.1} parent=1 // loop_exit
      _

</llo_original>
